<compile_context>
chip_gen: v7x
topology: tpu7x:2x2x1
jax: 0.10.0
libtpu: 0.0.40
codegen_flags: <defaults>
</compile_context>

<pallas_src>
import math

import numpy as np
import jax
import jax.numpy as jnp
from jax.experimental import pallas as pl
from jax.experimental.pallas import tpu as pltpu

# ------------------------- small, shape-consistent hyperparameters ------------
D = 32            # input_dim / d_model
H = 4             # num_heads
DH = D // H       # head dim
L = 2             # num_layers
F = D * 4         # dim_feedforward = input_dim * mlp_ratio
C = 2             # num_classes
N = 7             # input tokens (before cls)
S = N + 1         # sequence length after prepending cls token
B = 2             # batch
BS = B * S        # fused row count: [cls_0..cls_{B-1}, tok_0_0.., tok_1_0..]
HBS = H * BS      # head-replicated row count used by the batched attention
C_PAD = 128       # lane-dense padded logit width (kernel output)
EPS = 1e-5        # LayerNorm eps (PyTorch default)
SCALE = 1.0 / math.sqrt(DH)


def _gelu(x):
    # TODO(synk): PyTorch's activation='gelu' uses the exact erf-based GELU;
    # tanh approximation used here since erf is not guaranteed to lower in Mosaic.
    c = math.sqrt(2.0 / math.pi)
    return 0.5 * x * (1.0 + jnp.tanh(c * (x + 0.044715 * x * x * x)))


def _layernorm(x, g, b):
    mu = jnp.mean(x, axis=-1, keepdims=True)
    var = jnp.mean((x - mu) * (x - mu), axis=-1, keepdims=True)
    return (x - mu) * jax.lax.rsqrt(var + EPS) * g + b


# ------------------------------- Pallas kernel --------------------------------
def vit_kernel(x_ref, bias0_ref, mask_ref, hsel_ref, w_emb_ref,
               wqkv_ref, bqkv_ref, wo_ref, bo_ref,
               ln1g_ref, ln1b_ref, w1_ref, b1_ref, w2_ref, b2_ref,
               ln2g_ref, ln2b_ref,
               lnhg_ref, lnhb_ref, wh1_ref, bh1_ref, wh2_ref, bh2_ref,
               out_ref):
    # ---- embedding prologue: one matmul + one add for the whole batch ----
    # x rows [0, B) are zero (cls positions); bias0 carries cls there and
    # (b_emb + pos) on the token rows, so h is ready in registers immediately.
    h = jnp.dot(x_ref[...], w_emb_ref[...],
                preferred_element_type=jnp.float32) + bias0_ref[...]     # (BS, D)

    mask = mask_ref[...]      # (HBS, HBS) additive: 0 same (head, batch), -1e9 else
    hsel = hsel_ref[...]      # (HBS, D) 0/1: row block hd keeps only head hd lanes

    def vstack_heads(t):      # (BS, D) -> (HBS, D), aligned sublane concat
        return jnp.concatenate([t] * H, axis=0)

    # ---- transformer encoder layers (post-norm; dropout = identity) ----
    for l in range(L):
        # fused q/k/v projection: one (BS, D) @ (D, 3D) matmul per layer
        qkv = (jnp.dot(h, wqkv_ref[l], preferred_element_type=jnp.float32)
               + bqkv_ref[l])                                            # (BS, 3D)
        q = qkv[:, :D]
        k = qkv[:, D:2 * D]
        v = qkv[:, 2 * D:]

        # batched attention over every (batch, head) pair in ONE chain
        q_t = vstack_heads(q)                                            # (HBS, D)
        k_t = vstack_heads(k) * hsel                                     # (HBS, D)
        v_t = vstack_heads(v) * hsel                                     # (HBS, D)

        s = jax.lax.dot_general(q_t, k_t, (((1,), (1,)), ((), ())),
                                preferred_element_type=jnp.float32) * SCALE
        s = s + mask                                                     # (HBS, HBS)
        s = s - jnp.max(s, axis=-1, keepdims=True)
        e = jnp.exp(s)
        inv = pl.reciprocal(jnp.sum(e, axis=-1, keepdims=True), approx=True)
        p = e * inv                                                      # one softmax pass

        o = jnp.dot(p, v_t, preferred_element_type=jnp.float32)         # (HBS, D)
        # row block hd holds head hd's output in head hd's lanes (zeros
        # elsewhere); summing the H row blocks re-concatenates the heads.
        attn = o[:BS]
        for hd in range(1, H):
            attn = attn + o[hd * BS:(hd + 1) * BS]                       # (BS, D)

        attn_out = (jnp.dot(attn, wo_ref[l], preferred_element_type=jnp.float32)
                    + bo_ref[l])
        h = _layernorm(h + attn_out, ln1g_ref[l], ln1b_ref[l])

        ff = jnp.dot(h, w1_ref[l], preferred_element_type=jnp.float32) + b1_ref[l]
        ff = _gelu(ff)
        ff = jnp.dot(ff, w2_ref[l], preferred_element_type=jnp.float32) + b2_ref[l]
        h = _layernorm(h + ff, ln2g_ref[l], ln2b_ref[l])

    # ---- classification head on the B leading cls rows (contiguous slice) ----
    y = _layernorm(h[:B, :], lnhg_ref[...], lnhb_ref[...])               # (B, D)
    y = jnp.dot(y, wh1_ref[...], preferred_element_type=jnp.float32) + bh1_ref[...]
    y = _gelu(y)
    # wh2/bh2 are zero-padded to 128 output lanes -> full-width, unmasked store.
    y = jnp.dot(y, wh2_ref[...], preferred_element_type=jnp.float32) + bh2_ref[...]
    out_ref[...] = y                                                     # (B, 128)


# --------------------------------- wrapper ------------------------------------
def vit_forward(x, p):
    b_, n_, d_ = x.shape
    assert (b_, n_, d_) == (B, N, D), (b_, n_, d_)

    # ---- wrapper-side layout plumbing / parameter fusion (no input math) ----
    x2 = x.reshape(B * N, D)
    x_pad = jnp.concatenate([jnp.zeros((B, D), x.dtype), x2], axis=0)     # (BS, D)
    bias0 = jnp.concatenate(
        [jnp.tile(p["cls"], (B, 1)),                     # cls rows
         jnp.tile(p["b_emb"] + p["pos"], (B * N, 1))],   # token rows
        axis=0).astype(jnp.float32)                                       # (BS, D)

    wqkv = jnp.concatenate([p["wq"], p["wk"], p["wv"]], axis=-1)          # (L, D, 3D)
    bqkv = jnp.concatenate([p["bq"], p["bk"], p["bv"]], axis=-1)          # (L, 1, 3D)

    # (head, batch) block-diagonal additive mask + per-head lane selector
    bid = np.array([r if r < B else (r - B) // N for r in range(BS)])
    same_batch = bid[:, None] == bid[None, :]                             # (BS, BS)
    blk = np.arange(HBS) // BS                                            # head per row
    same_head = blk[:, None] == blk[None, :]                              # (HBS, HBS)
    mask = jnp.asarray(
        np.where(same_head & np.tile(same_batch, (H, H)), 0.0, -1e9),
        dtype=jnp.float32)
    lane_head = np.arange(D) // DH
    hsel = jnp.asarray((blk[:, None] == lane_head[None, :]).astype(np.float32))

    args = [x_pad, bias0, mask, hsel, p["w_emb"], wqkv, bqkv,
            p["wo"], p["bo"], p["ln1g"], p["ln1b"], p["w1"], p["b1"],
            p["w2"], p["b2"], p["ln2g"], p["ln2b"],
            p["lnhg"], p["lnhb"], p["wh1"], p["bh1"], p["wh2p"], p["bh2p"]]

    def full(a):
        nd = a.ndim
        return pl.BlockSpec(a.shape, lambda i, nd=nd: (0,) * nd)

    out = pl.pallas_call(
        vit_kernel,
        out_shape=jax.ShapeDtypeStruct((B, C_PAD), jnp.float32),
        grid_spec=pltpu.PrefetchScalarGridSpec(
            num_scalar_prefetch=0,
            grid=(1,),                                   # single fused grid step
            in_specs=[full(a) for a in args],
            out_specs=pl.BlockSpec((B, C_PAD), lambda i: (0, 0)),
        ),
        compiler_params=pltpu.CompilerParams(
            dimension_semantics=("arbitrary",)),
    )(*args)
    return out[:, :C]


# ------------------------------ parameter init --------------------------------
def init_params(key):
    ks = jax.random.split(key, 26)

    def nrm(k, shape, scale=0.02):
        return (scale * jax.random.normal(k, shape)).astype(jnp.float32)

    p = {}
    p["w_emb"] = nrm(ks[0], (D, D))
    p["b_emb"] = nrm(ks[1], (1, D))
    p["pos"] = jax.random.normal(ks[2], (1, D), jnp.float32)     # pos_embedding
    p["cls"] = jax.random.normal(ks[3], (1, D), jnp.float32)     # cls_token
    p["wq"] = nrm(ks[4], (L, D, D))
    p["wk"] = nrm(ks[5], (L, D, D))
    p["wv"] = nrm(ks[6], (L, D, D))
    p["bq"] = nrm(ks[7], (L, 1, D))
    p["bk"] = nrm(ks[8], (L, 1, D))
    p["bv"] = nrm(ks[9], (L, 1, D))
    p["wo"] = nrm(ks[10], (L, D, D))
    p["bo"] = nrm(ks[11], (L, 1, D))
    p["ln1g"] = jnp.ones((L, 1, D), jnp.float32) + nrm(ks[12], (L, 1, D))
    p["ln1b"] = nrm(ks[13], (L, 1, D))
    p["w1"] = nrm(ks[14], (L, D, F))
    p["b1"] = nrm(ks[15], (L, 1, F))
    p["w2"] = nrm(ks[16], (L, F, D))
    p["b2"] = nrm(ks[17], (L, 1, D))
    p["ln2g"] = jnp.ones((L, 1, D), jnp.float32) + nrm(ks[18], (L, 1, D))
    p["ln2b"] = nrm(ks[19], (L, 1, D))
    p["lnhg"] = jnp.ones((1, D), jnp.float32) + nrm(ks[20], (1, D))
    p["lnhb"] = nrm(ks[21], (1, D))
    p["wh1"] = nrm(ks[22], (D, D // 2))
    p["bh1"] = nrm(ks[23], (1, D // 2))
    wh2 = nrm(ks[24], (D // 2, C))
    bh2 = nrm(ks[25], (1, C))
    # zero-pad the final classifier to 128 output lanes (lane-dense store)
    p["wh2p"] = jnp.zeros((D // 2, C_PAD), jnp.float32).at[:, :C].set(wh2)
    p["bh2p"] = jnp.zeros((1, C_PAD), jnp.float32).at[:, :C].set(bh2)
    return p


# ---------------------------- pure-JAX reference ------------------------------
def vit_reference(x, p):
    b_ = x.shape[0]
    emb = x @ p["w_emb"] + p["b_emb"] + p["pos"]                    # (B, N, D)
    cls = jnp.broadcast_to(p["cls"][None], (b_, 1, D))
    h = jnp.concatenate([cls, emb], axis=1)                         # (B, S, D)
    for l in range(L):
        q = h @ p["wq"][l] + p["bq"][l]
        k = h @ p["wk"][l] + p["bk"][l]
        v = h @ p["wv"][l] + p["bv"][l]

        def split(t):
            return t.reshape(b_, S, H, DH).transpose(0, 2, 1, 3)

        qh, kh, vh = split(q), split(k), split(v)                   # (B, H, S, DH)
        scores = jnp.einsum("bhqd,bhkd->bhqk", qh, kh) / math.sqrt(DH)
        attn = jax.nn.softmax(scores, axis=-1)
        o = jnp.einsum("bhqk,bhkd->bhqd", attn, vh)
        o = o.transpose(0, 2, 1, 3).reshape(b_, S, D)
        attn_out = o @ p["wo"][l] + p["bo"][l]
        h = _layernorm(h + attn_out, p["ln1g"][l], p["ln1b"][l])
        ff = _gelu(h @ p["w1"][l] + p["b1"][l]) @ p["w2"][l] + p["b2"][l]
        h = _layernorm(h + ff, p["ln2g"][l], p["ln2b"][l])
    y = _layernorm(h[:, 0], p["lnhg"], p["lnhb"])
    y = _gelu(y @ p["wh1"] + p["bh1"])
    return y @ p["wh2p"][:, :C] + p["bh2p"][:, :C]


if __name__ == "__main__":
    key = jax.random.PRNGKey(0)
    kx, kp = jax.random.split(key)
    x = jax.random.normal(kx, (B, N, D), jnp.float32)
    params = init_params(kp)

    out = vit_forward(x, params)
    out = jax.block_until_ready(out)
    assert out.shape == (B, C), out.shape

    ref = vit_reference(x, params)
    if not jnp.allclose(out, ref, atol=2e-3, rtol=2e-3):
        raise AssertionError(f"kernel/reference mismatch:\n{out}\nvs\n{ref}")

    print("KERNEL_OK")
</pallas_src>

<mosaic_0001>
module attributes {stable_mosaic.version = 11 : i64} {
  func.func @vit_kernel(%arg0: i32, %arg1: memref<16x32xf32, #tpu.memory_space<vmem>>, %arg2: memref<16x32xf32, #tpu.memory_space<vmem>>, %arg3: memref<64x64xf32, #tpu.memory_space<vmem>>, %arg4: memref<64x32xf32, #tpu.memory_space<vmem>>, %arg5: memref<32x32xf32, #tpu.memory_space<vmem>>, %arg6: memref<2x32x96xf32, #tpu.memory_space<vmem>>, %arg7: memref<2x1x96xf32, #tpu.memory_space<vmem>>, %arg8: memref<2x32x32xf32, #tpu.memory_space<vmem>>, %arg9: memref<2x1x32xf32, #tpu.memory_space<vmem>>, %arg10: memref<2x1x32xf32, #tpu.memory_space<vmem>>, %arg11: memref<2x1x32xf32, #tpu.memory_space<vmem>>, %arg12: memref<2x32x128xf32, #tpu.memory_space<vmem>>, %arg13: memref<2x1x128xf32, #tpu.memory_space<vmem>>, %arg14: memref<2x128x32xf32, #tpu.memory_space<vmem>>, %arg15: memref<2x1x32xf32, #tpu.memory_space<vmem>>, %arg16: memref<2x1x32xf32, #tpu.memory_space<vmem>>, %arg17: memref<2x1x32xf32, #tpu.memory_space<vmem>>, %arg18: memref<1x32xf32, #tpu.memory_space<vmem>>, %arg19: memref<1x32xf32, #tpu.memory_space<vmem>>, %arg20: memref<32x16xf32, #tpu.memory_space<vmem>>, %arg21: memref<1x16xf32, #tpu.memory_space<vmem>>, %arg22: memref<16x128xf32, #tpu.memory_space<vmem>>, %arg23: memref<1x128xf32, #tpu.memory_space<vmem>>, %arg24: memref<2x128xf32, #tpu.memory_space<vmem>>) attributes {dimension_semantics = [#tpu.dimension_semantics<arbitrary>], iteration_bounds = array<i64: 1>, scalar_prefetch = 0 : i64, scratch_operands = 0 : i64, tpu.core_type = #tpu.core_type<tc>, window_params = [{pipeline_mode = #tpu.pipeline_mode<synchronous>, transform_indices = @transform_0, window_bounds = array<i64: 16, 32>}, {pipeline_mode = #tpu.pipeline_mode<synchronous>, transform_indices = @transform_1, window_bounds = array<i64: 16, 32>}, {pipeline_mode = #tpu.pipeline_mode<synchronous>, transform_indices = @transform_2, window_bounds = array<i64: 64, 64>}, {pipeline_mode = #tpu.pipeline_mode<synchronous>, transform_indices = @transform_3, window_bounds = array<i64: 64, 32>}, {pipeline_mode = #tpu.pipeline_mode<synchronous>, transform_indices = @transform_4, window_bounds = array<i64: 32, 32>}, {pipeline_mode = #tpu.pipeline_mode<synchronous>, transform_indices = @transform_5, window_bounds = array<i64: 2, 32, 96>}, {pipeline_mode = #tpu.pipeline_mode<synchronous>, transform_indices = @transform_6, window_bounds = array<i64: 2, 1, 96>}, {pipeline_mode = #tpu.pipeline_mode<synchronous>, transform_indices = @transform_7, window_bounds = array<i64: 2, 32, 32>}, {pipeline_mode = #tpu.pipeline_mode<synchronous>, transform_indices = @transform_8, window_bounds = array<i64: 2, 1, 32>}, {pipeline_mode = #tpu.pipeline_mode<synchronous>, transform_indices = @transform_9, window_bounds = array<i64: 2, 1, 32>}, {pipeline_mode = #tpu.pipeline_mode<synchronous>, transform_indices = @transform_10, window_bounds = array<i64: 2, 1, 32>}, {pipeline_mode = #tpu.pipeline_mode<synchronous>, transform_indices = @transform_11, window_bounds = array<i64: 2, 32, 128>}, {pipeline_mode = #tpu.pipeline_mode<synchronous>, transform_indices = @transform_12, window_bounds = array<i64: 2, 1, 128>}, {pipeline_mode = #tpu.pipeline_mode<synchronous>, transform_indices = @transform_13, window_bounds = array<i64: 2, 128, 32>}, {pipeline_mode = #tpu.pipeline_mode<synchronous>, transform_indices = @transform_14, window_bounds = array<i64: 2, 1, 32>}, {pipeline_mode = #tpu.pipeline_mode<synchronous>, transform_indices = @transform_15, window_bounds = array<i64: 2, 1, 32>}, {pipeline_mode = #tpu.pipeline_mode<synchronous>, transform_indices = @transform_16, window_bounds = array<i64: 2, 1, 32>}, {pipeline_mode = #tpu.pipeline_mode<synchronous>, transform_indices = @transform_17, window_bounds = array<i64: 1, 32>}, {pipeline_mode = #tpu.pipeline_mode<synchronous>, transform_indices = @transform_18, window_bounds = array<i64: 1, 32>}, {pipeline_mode = #tpu.pipeline_mode<synchronous>, transform_indices = @transform_19, window_bounds = array<i64: 32, 16>}, {pipeline_mode = #tpu.pipeline_mode<synchronous>, transform_indices = @transform_20, window_bounds = array<i64: 1, 16>}, {pipeline_mode = #tpu.pipeline_mode<synchronous>, transform_indices = @transform_21, window_bounds = array<i64: 16, 128>}, {pipeline_mode = #tpu.pipeline_mode<synchronous>, transform_indices = @transform_22, window_bounds = array<i64: 1, 128>}, {pipeline_mode = #tpu.pipeline_mode<synchronous>, transform_indices = @transform_23, window_bounds = array<i64: 2, 128>}]} {
    %c0 = arith.constant 0 : index
    %c0_0 = arith.constant 0 : index
    %0 = vector.load %arg1[%c0, %c0_0] : memref<16x32xf32, #tpu.memory_space<vmem>>, vector<16x32xf32>
    %c0_1 = arith.constant 0 : index
    %c0_2 = arith.constant 0 : index
    %1 = vector.load %arg5[%c0_1, %c0_2] : memref<32x32xf32, #tpu.memory_space<vmem>>, vector<32x32xf32>
    %cst = arith.constant dense<0.000000e+00> : vector<16x32xf32>
    %2 = tpu.matmul %0, %1, %cst {dimension_numbers = #tpu.dot_dimension_numbers<[1], [0], [0], [1], [0, 0, 1, 1], [], []>} : vector<16x32xf32>, vector<32x32xf32>, vector<16x32xf32> -> vector<16x32xf32>
    %c0_3 = arith.constant 0 : index
    %c0_4 = arith.constant 0 : index
    %3 = vector.load %arg2[%c0_3, %c0_4] : memref<16x32xf32, #tpu.memory_space<vmem>>, vector<16x32xf32>
    %4 = arith.addf %2, %3 : vector<16x32xf32>
    %c0_5 = arith.constant 0 : index
    %c0_6 = arith.constant 0 : index
    %5 = vector.load %arg3[%c0_5, %c0_6] : memref<64x64xf32, #tpu.memory_space<vmem>>, vector<64x64xf32>
    %c0_7 = arith.constant 0 : index
    %c0_8 = arith.constant 0 : index
    %6 = vector.load %arg4[%c0_7, %c0_8] : memref<64x32xf32, #tpu.memory_space<vmem>>, vector<64x32xf32>
    %c0_9 = arith.constant 0 : index
    %c0_10 = arith.constant 0 : index
    %c0_11 = arith.constant 0 : index
    %7 = vector.load %arg6[%c0_9, %c0_10, %c0_11] : memref<2x32x96xf32, #tpu.memory_space<vmem>>, vector<1x32x96xf32>
    %8 = vector.shape_cast %7 : vector<1x32x96xf32> to vector<32x96xf32>
    %cst_12 = arith.constant dense<0.000000e+00> : vector<16x96xf32>
    %9 = tpu.matmul %4, %8, %cst_12 {dimension_numbers = #tpu.dot_dimension_numbers<[1], [0], [0], [1], [0, 0, 1, 1], [], []>} : vector<16x32xf32>, vector<32x96xf32>, vector<16x96xf32> -> vector<16x96xf32>
    %c0_13 = arith.constant 0 : index
    %c0_14 = arith.constant 0 : index
    %c0_15 = arith.constant 0 : index
    %10 = vector.load %arg7[%c0_13, %c0_14, %c0_15] : memref<2x1x96xf32, #tpu.memory_space<vmem>>, vector<1x1x96xf32>
    %11 = vector.shape_cast %10 : vector<1x1x96xf32> to vector<1x96xf32>
    %12 = vector.broadcast %11 : vector<1x96xf32> to vector<16x96xf32>
    %13 = arith.addf %9, %12 : vector<16x96xf32>
    %14 = vector.extract_strided_slice %13 {offsets = [0, 0], sizes = [16, 32], strides = [1, 1]} : vector<16x96xf32> to vector<16x32xf32>
    %15 = vector.extract_strided_slice %13 {offsets = [0, 32], sizes = [16, 32], strides = [1, 1]} : vector<16x96xf32> to vector<16x32xf32>
    %16 = vector.extract_strided_slice %13 {offsets = [0, 64], sizes = [16, 32], strides = [1, 1]} : vector<16x96xf32> to vector<16x32xf32>
    %17 = tpu.concatenate %14, %14, %14, %14 in 0 : vector<16x32xf32>, vector<16x32xf32>, vector<16x32xf32>, vector<16x32xf32> -> vector<64x32xf32>
    %18 = tpu.concatenate %15, %15, %15, %15 in 0 : vector<16x32xf32>, vector<16x32xf32>, vector<16x32xf32>, vector<16x32xf32> -> vector<64x32xf32>
    %19 = arith.mulf %18, %6 : vector<64x32xf32>
    %20 = tpu.concatenate %16, %16, %16, %16 in 0 : vector<16x32xf32>, vector<16x32xf32>, vector<16x32xf32>, vector<16x32xf32> -> vector<64x32xf32>
    %21 = arith.mulf %20, %6 : vector<64x32xf32>
    %cst_16 = arith.constant dense<0.000000e+00> : vector<64x64xf32>
    %22 = tpu.matmul %17, %19, %cst_16 {dimension_numbers = #tpu.dot_dimension_numbers<[1], [1], [0], [0], [0, 0, 1, 0], [], []>} : vector<64x32xf32>, vector<64x32xf32>, vector<64x64xf32> -> vector<64x64xf32>
    %cst_17 = arith.constant 0.353553385 : f32
    %23 = vector.broadcast %cst_17 : f32 to vector<64x64xf32>
    %24 = arith.mulf %22, %23 : vector<64x64xf32>
    %25 = arith.addf %24, %5 : vector<64x64xf32>
    %cst_18 = arith.constant dense<0xFF800000> : vector<64xf32>
    %26 = vector.multi_reduction <maximumf>, %25, %cst_18 [1] : vector<64x64xf32> to vector<64xf32>
    %27 = vector.shape_cast %26 : vector<64xf32> to vector<64x1xf32>
    %28 = vector.broadcast %27 : vector<64x1xf32> to vector<64x64xf32>
    %29 = arith.subf %25, %28 : vector<64x64xf32>
    %30 = math.exp %29 : vector<64x64xf32>
    %cst_19 = arith.constant dense<0.000000e+00> : vector<64xf32>
    %31 = vector.multi_reduction <add>, %30, %cst_19 [1] : vector<64x64xf32> to vector<64xf32>
    %32 = vector.shape_cast %31 : vector<64xf32> to vector<64x1xf32>
    %33 = tpu.reciprocal %32 {approx = true} : vector<64x1xf32> -> vector<64x1xf32>
    %34 = vector.broadcast %33 : vector<64x1xf32> to vector<64x64xf32>
    %35 = arith.mulf %30, %34 : vector<64x64xf32>
    %cst_20 = arith.constant dense<0.000000e+00> : vector<64x32xf32>
    %36 = tpu.matmul %35, %21, %cst_20 {dimension_numbers = #tpu.dot_dimension_numbers<[1], [0], [0], [1], [0, 0, 1, 1], [], []>} : vector<64x64xf32>, vector<64x32xf32>, vector<64x32xf32> -> vector<64x32xf32>
    %37 = vector.extract_strided_slice %36 {offsets = [0, 0], sizes = [16, 32], strides = [1, 1]} : vector<64x32xf32> to vector<16x32xf32>
    %38 = vector.extract_strided_slice %36 {offsets = [16, 0], sizes = [16, 32], strides = [1, 1]} : vector<64x32xf32> to vector<16x32xf32>
    %39 = arith.addf %37, %38 : vector<16x32xf32>
    %40 = vector.extract_strided_slice %36 {offsets = [32, 0], sizes = [16, 32], strides = [1, 1]} : vector<64x32xf32> to vector<16x32xf32>
    %41 = arith.addf %39, %40 : vector<16x32xf32>
    %42 = vector.extract_strided_slice %36 {offsets = [48, 0], sizes = [16, 32], strides = [1, 1]} : vector<64x32xf32> to vector<16x32xf32>
    %43 = arith.addf %41, %42 : vector<16x32xf32>
    %c0_21 = arith.constant 0 : index
    %c0_22 = arith.constant 0 : index
    %c0_23 = arith.constant 0 : index
    %44 = vector.load %arg8[%c0_21, %c0_22, %c0_23] : memref<2x32x32xf32, #tpu.memory_space<vmem>>, vector<1x32x32xf32>
    %45 = vector.shape_cast %44 : vector<1x32x32xf32> to vector<32x32xf32>
    %cst_24 = arith.constant dense<0.000000e+00> : vector<16x32xf32>
    %46 = tpu.matmul %43, %45, %cst_24 {dimension_numbers = #tpu.dot_dimension_numbers<[1], [0], [0], [1], [0, 0, 1, 1], [], []>} : vector<16x32xf32>, vector<32x32xf32>, vector<16x32xf32> -> vector<16x32xf32>
    %c0_25 = arith.constant 0 : index
    %c0_26 = arith.constant 0 : index
    %c0_27 = arith.constant 0 : index
    %47 = vector.load %arg9[%c0_25, %c0_26, %c0_27] : memref<2x1x32xf32, #tpu.memory_space<vmem>>, vector<1x1x32xf32>
    %48 = vector.shape_cast %47 : vector<1x1x32xf32> to vector<1x32xf32>
    %49 = vector.broadcast %48 : vector<1x32xf32> to vector<16x32xf32>
    %50 = arith.addf %46, %49 : vector<16x32xf32>
    %51 = arith.addf %4, %50 : vector<16x32xf32>
    %c0_28 = arith.constant 0 : index
    %c0_29 = arith.constant 0 : index
    %c0_30 = arith.constant 0 : index
    %52 = vector.load %arg10[%c0_28, %c0_29, %c0_30] : memref<2x1x32xf32, #tpu.memory_space<vmem>>, vector<1x1x32xf32>
    %53 = vector.shape_cast %52 : vector<1x1x32xf32> to vector<1x32xf32>
    %c0_31 = arith.constant 0 : index
    %c0_32 = arith.constant 0 : index
    %c0_33 = arith.constant 0 : index
    %54 = vector.load %arg11[%c0_31, %c0_32, %c0_33] : memref<2x1x32xf32, #tpu.memory_space<vmem>>, vector<1x1x32xf32>
    %55 = vector.shape_cast %54 : vector<1x1x32xf32> to vector<1x32xf32>
    %cst_34 = arith.constant dense<0.000000e+00> : vector<16xf32>
    %56 = vector.multi_reduction <add>, %51, %cst_34 [1] : vector<16x32xf32> to vector<16xf32>
    %57 = vector.shape_cast %56 : vector<16xf32> to vector<16x1xf32>
    %cst_35 = arith.constant 3.200000e+01 : f32
    %58 = vector.broadcast %cst_35 : f32 to vector<16x1xf32>
    %59 = arith.divf %57, %58 : vector<16x1xf32>
    %60 = vector.broadcast %59 : vector<16x1xf32> to vector<16x32xf32>
    %61 = arith.subf %51, %60 : vector<16x32xf32>
    %62 = vector.broadcast %59 : vector<16x1xf32> to vector<16x32xf32>
    %63 = arith.subf %51, %62 : vector<16x32xf32>
    %64 = arith.mulf %61, %63 : vector<16x32xf32>
    %cst_36 = arith.constant dense<0.000000e+00> : vector<16xf32>
    %65 = vector.multi_reduction <add>, %64, %cst_36 [1] : vector<16x32xf32> to vector<16xf32>
    %66 = vector.shape_cast %65 : vector<16xf32> to vector<16x1xf32>
    %cst_37 = arith.constant 3.200000e+01 : f32
    %67 = vector.broadcast %cst_37 : f32 to vector<16x1xf32>
    %68 = arith.divf %66, %67 : vector<16x1xf32>
    %69 = vector.broadcast %59 : vector<16x1xf32> to vector<16x32xf32>
    %70 = arith.subf %51, %69 : vector<16x32xf32>
    %cst_38 = arith.constant 9.99999974E-6 : f32
    %71 = vector.broadcast %cst_38 : f32 to vector<16x1xf32>
    %72 = arith.addf %68, %71 : vector<16x1xf32>
    %73 = math.rsqrt %72 : vector<16x1xf32>
    %74 = vector.broadcast %73 : vector<16x1xf32> to vector<16x32xf32>
    %75 = arith.mulf %70, %74 : vector<16x32xf32>
    %76 = vector.broadcast %53 : vector<1x32xf32> to vector<16x32xf32>
    %77 = arith.mulf %75, %76 : vector<16x32xf32>
    %78 = vector.broadcast %55 : vector<1x32xf32> to vector<16x32xf32>
    %79 = arith.addf %77, %78 : vector<16x32xf32>
    %c0_39 = arith.constant 0 : index
    %c0_40 = arith.constant 0 : index
    %c0_41 = arith.constant 0 : index
    %80 = vector.load %arg12[%c0_39, %c0_40, %c0_41] : memref<2x32x128xf32, #tpu.memory_space<vmem>>, vector<1x32x128xf32>
    %81 = vector.shape_cast %80 : vector<1x32x128xf32> to vector<32x128xf32>
    %cst_42 = arith.constant dense<0.000000e+00> : vector<16x128xf32>
    %82 = tpu.matmul %79, %81, %cst_42 {dimension_numbers = #tpu.dot_dimension_numbers<[1], [0], [0], [1], [0, 0, 1, 1], [], []>} : vector<16x32xf32>, vector<32x128xf32>, vector<16x128xf32> -> vector<16x128xf32>
    %c0_43 = arith.constant 0 : index
    %c0_44 = arith.constant 0 : index
    %c0_45 = arith.constant 0 : index
    %83 = vector.load %arg13[%c0_43, %c0_44, %c0_45] : memref<2x1x128xf32, #tpu.memory_space<vmem>>, vector<1x1x128xf32>
    %84 = vector.shape_cast %83 : vector<1x1x128xf32> to vector<1x128xf32>
    %85 = vector.broadcast %84 : vector<1x128xf32> to vector<16x128xf32>
    %86 = arith.addf %82, %85 : vector<16x128xf32>
    %cst_46 = arith.constant 5.000000e-01 : f32
    %87 = vector.broadcast %cst_46 : f32 to vector<16x128xf32>
    %88 = arith.mulf %87, %86 : vector<16x128xf32>
    %cst_47 = arith.constant 4.471500e-02 : f32
    %89 = vector.broadcast %cst_47 : f32 to vector<16x128xf32>
    %90 = arith.mulf %89, %86 : vector<16x128xf32>
    %91 = arith.mulf %90, %86 : vector<16x128xf32>
    %92 = arith.mulf %91, %86 : vector<16x128xf32>
    %93 = arith.addf %86, %92 : vector<16x128xf32>
    %cst_48 = arith.constant 0.797884583 : f32
    %94 = vector.broadcast %cst_48 : f32 to vector<16x128xf32>
    %95 = arith.mulf %94, %93 : vector<16x128xf32>
    %96 = math.tanh %95 : vector<16x128xf32>
    %cst_49 = arith.constant 1.000000e+00 : f32
    %97 = vector.broadcast %cst_49 : f32 to vector<16x128xf32>
    %98 = arith.addf %97, %96 : vector<16x128xf32>
    %99 = arith.mulf %88, %98 : vector<16x128xf32>
    %c0_50 = arith.constant 0 : index
    %c0_51 = arith.constant 0 : index
    %c0_52 = arith.constant 0 : index
    %100 = vector.load %arg14[%c0_50, %c0_51, %c0_52] : memref<2x128x32xf32, #tpu.memory_space<vmem>>, vector<1x128x32xf32>
    %101 = vector.shape_cast %100 : vector<1x128x32xf32> to vector<128x32xf32>
    %cst_53 = arith.constant dense<0.000000e+00> : vector<16x32xf32>
    %102 = tpu.matmul %99, %101, %cst_53 {dimension_numbers = #tpu.dot_dimension_numbers<[1], [0], [0], [1], [0, 0, 1, 1], [], []>} : vector<16x128xf32>, vector<128x32xf32>, vector<16x32xf32> -> vector<16x32xf32>
    %c0_54 = arith.constant 0 : index
    %c0_55 = arith.constant 0 : index
    %c0_56 = arith.constant 0 : index
    %103 = vector.load %arg15[%c0_54, %c0_55, %c0_56] : memref<2x1x32xf32, #tpu.memory_space<vmem>>, vector<1x1x32xf32>
    %104 = vector.shape_cast %103 : vector<1x1x32xf32> to vector<1x32xf32>
    %105 = vector.broadcast %104 : vector<1x32xf32> to vector<16x32xf32>
    %106 = arith.addf %102, %105 : vector<16x32xf32>
    %107 = arith.addf %79, %106 : vector<16x32xf32>
    %c0_57 = arith.constant 0 : index
    %c0_58 = arith.constant 0 : index
    %c0_59 = arith.constant 0 : index
    %108 = vector.load %arg16[%c0_57, %c0_58, %c0_59] : memref<2x1x32xf32, #tpu.memory_space<vmem>>, vector<1x1x32xf32>
    %109 = vector.shape_cast %108 : vector<1x1x32xf32> to vector<1x32xf32>
    %c0_60 = arith.constant 0 : index
    %c0_61 = arith.constant 0 : index
    %c0_62 = arith.constant 0 : index
    %110 = vector.load %arg17[%c0_60, %c0_61, %c0_62] : memref<2x1x32xf32, #tpu.memory_space<vmem>>, vector<1x1x32xf32>
    %111 = vector.shape_cast %110 : vector<1x1x32xf32> to vector<1x32xf32>
    %cst_63 = arith.constant dense<0.000000e+00> : vector<16xf32>
    %112 = vector.multi_reduction <add>, %107, %cst_63 [1] : vector<16x32xf32> to vector<16xf32>
    %113 = vector.shape_cast %112 : vector<16xf32> to vector<16x1xf32>
    %cst_64 = arith.constant 3.200000e+01 : f32
    %114 = vector.broadcast %cst_64 : f32 to vector<16x1xf32>
    %115 = arith.divf %113, %114 : vector<16x1xf32>
    %116 = vector.broadcast %115 : vector<16x1xf32> to vector<16x32xf32>
    %117 = arith.subf %107, %116 : vector<16x32xf32>
    %118 = vector.broadcast %115 : vector<16x1xf32> to vector<16x32xf32>
    %119 = arith.subf %107, %118 : vector<16x32xf32>
    %120 = arith.mulf %117, %119 : vector<16x32xf32>
    %cst_65 = arith.constant dense<0.000000e+00> : vector<16xf32>
    %121 = vector.multi_reduction <add>, %120, %cst_65 [1] : vector<16x32xf32> to vector<16xf32>
    %122 = vector.shape_cast %121 : vector<16xf32> to vector<16x1xf32>
    %cst_66 = arith.constant 3.200000e+01 : f32
    %123 = vector.broadcast %cst_66 : f32 to vector<16x1xf32>
    %124 = arith.divf %122, %123 : vector<16x1xf32>
    %125 = vector.broadcast %115 : vector<16x1xf32> to vector<16x32xf32>
    %126 = arith.subf %107, %125 : vector<16x32xf32>
    %cst_67 = arith.constant 9.99999974E-6 : f32
    %127 = vector.broadcast %cst_67 : f32 to vector<16x1xf32>
    %128 = arith.addf %124, %127 : vector<16x1xf32>
    %129 = math.rsqrt %128 : vector<16x1xf32>
    %130 = vector.broadcast %129 : vector<16x1xf32> to vector<16x32xf32>
    %131 = arith.mulf %126, %130 : vector<16x32xf32>
    %132 = vector.broadcast %109 : vector<1x32xf32> to vector<16x32xf32>
    %133 = arith.mulf %131, %132 : vector<16x32xf32>
    %134 = vector.broadcast %111 : vector<1x32xf32> to vector<16x32xf32>
    %135 = arith.addf %133, %134 : vector<16x32xf32>
    %c1 = arith.constant 1 : index
    %c0_68 = arith.constant 0 : index
    %c0_69 = arith.constant 0 : index
    %136 = vector.load %arg6[%c1, %c0_68, %c0_69] : memref<2x32x96xf32, #tpu.memory_space<vmem>>, vector<1x32x96xf32>
    %137 = vector.shape_cast %136 : vector<1x32x96xf32> to vector<32x96xf32>
    %cst_70 = arith.constant dense<0.000000e+00> : vector<16x96xf32>
    %138 = tpu.matmul %135, %137, %cst_70 {dimension_numbers = #tpu.dot_dimension_numbers<[1], [0], [0], [1], [0, 0, 1, 1], [], []>} : vector<16x32xf32>, vector<32x96xf32>, vector<16x96xf32> -> vector<16x96xf32>
    %c1_71 = arith.constant 1 : index
    %c0_72 = arith.constant 0 : index
    %c0_73 = arith.constant 0 : index
    %139 = vector.load %arg7[%c1_71, %c0_72, %c0_73] : memref<2x1x96xf32, #tpu.memory_space<vmem>>, vector<1x1x96xf32>
    %140 = vector.shape_cast %139 : vector<1x1x96xf32> to vector<1x96xf32>
    %141 = vector.broadcast %140 : vector<1x96xf32> to vector<16x96xf32>
    %142 = arith.addf %138, %141 : vector<16x96xf32>
    %143 = vector.extract_strided_slice %142 {offsets = [0, 0], sizes = [16, 32], strides = [1, 1]} : vector<16x96xf32> to vector<16x32xf32>
    %144 = vector.extract_strided_slice %142 {offsets = [0, 32], sizes = [16, 32], strides = [1, 1]} : vector<16x96xf32> to vector<16x32xf32>
    %145 = vector.extract_strided_slice %142 {offsets = [0, 64], sizes = [16, 32], strides = [1, 1]} : vector<16x96xf32> to vector<16x32xf32>
    %146 = tpu.concatenate %143, %143, %143, %143 in 0 : vector<16x32xf32>, vector<16x32xf32>, vector<16x32xf32>, vector<16x32xf32> -> vector<64x32xf32>
    %147 = tpu.concatenate %144, %144, %144, %144 in 0 : vector<16x32xf32>, vector<16x32xf32>, vector<16x32xf32>, vector<16x32xf32> -> vector<64x32xf32>
    %148 = arith.mulf %147, %6 : vector<64x32xf32>
    %149 = tpu.concatenate %145, %145, %145, %145 in 0 : vector<16x32xf32>, vector<16x32xf32>, vector<16x32xf32>, vector<16x32xf32> -> vector<64x32xf32>
    %150 = arith.mulf %149, %6 : vector<64x32xf32>
    %cst_74 = arith.constant dense<0.000000e+00> : vector<64x64xf32>
    %151 = tpu.matmul %146, %148, %cst_74 {dimension_numbers = #tpu.dot_dimension_numbers<[1], [1], [0], [0], [0, 0, 1, 0], [], []>} : vector<64x32xf32>, vector<64x32xf32>, vector<64x64xf32> -> vector<64x64xf32>
    %cst_75 = arith.constant 0.353553385 : f32
    %152 = vector.broadcast %cst_75 : f32 to vector<64x64xf32>
    %153 = arith.mulf %151, %152 : vector<64x64xf32>
    %154 = arith.addf %153, %5 : vector<64x64xf32>
    %cst_76 = arith.constant dense<0xFF800000> : vector<64xf32>
    %155 = vector.multi_reduction <maximumf>, %154, %cst_76 [1] : vector<64x64xf32> to vector<64xf32>
    %156 = vector.shape_cast %155 : vector<64xf32> to vector<64x1xf32>
    %157 = vector.broadcast %156 : vector<64x1xf32> to vector<64x64xf32>
    %158 = arith.subf %154, %157 : vector<64x64xf32>
    %159 = math.exp %158 : vector<64x64xf32>
    %cst_77 = arith.constant dense<0.000000e+00> : vector<64xf32>
    %160 = vector.multi_reduction <add>, %159, %cst_77 [1] : vector<64x64xf32> to vector<64xf32>
    %161 = vector.shape_cast %160 : vector<64xf32> to vector<64x1xf32>
    %162 = tpu.reciprocal %161 {approx = true} : vector<64x1xf32> -> vector<64x1xf32>
    %163 = vector.broadcast %162 : vector<64x1xf32> to vector<64x64xf32>
    %164 = arith.mulf %159, %163 : vector<64x64xf32>
    %cst_78 = arith.constant dense<0.000000e+00> : vector<64x32xf32>
    %165 = tpu.matmul %164, %150, %cst_78 {dimension_numbers = #tpu.dot_dimension_numbers<[1], [0], [0], [1], [0, 0, 1, 1], [], []>} : vector<64x64xf32>, vector<64x32xf32>, vector<64x32xf32> -> vector<64x32xf32>
    %166 = vector.extract_strided_slice %165 {offsets = [0, 0], sizes = [16, 32], strides = [1, 1]} : vector<64x32xf32> to vector<16x32xf32>
    %167 = vector.extract_strided_slice %165 {offsets = [16, 0], sizes = [16, 32], strides = [1, 1]} : vector<64x32xf32> to vector<16x32xf32>
    %168 = arith.addf %166, %167 : vector<16x32xf32>
    %169 = vector.extract_strided_slice %165 {offsets = [32, 0], sizes = [16, 32], strides = [1, 1]} : vector<64x32xf32> to vector<16x32xf32>
    %170 = arith.addf %168, %169 : vector<16x32xf32>
    %171 = vector.extract_strided_slice %165 {offsets = [48, 0], sizes = [16, 32], strides = [1, 1]} : vector<64x32xf32> to vector<16x32xf32>
    %172 = arith.addf %170, %171 : vector<16x32xf32>
    %c1_79 = arith.constant 1 : index
    %c0_80 = arith.constant 0 : index
    %c0_81 = arith.constant 0 : index
    %173 = vector.load %arg8[%c1_79, %c0_80, %c0_81] : memref<2x32x32xf32, #tpu.memory_space<vmem>>, vector<1x32x32xf32>
    %174 = vector.shape_cast %173 : vector<1x32x32xf32> to vector<32x32xf32>
    %cst_82 = arith.constant dense<0.000000e+00> : vector<16x32xf32>
    %175 = tpu.matmul %172, %174, %cst_82 {dimension_numbers = #tpu.dot_dimension_numbers<[1], [0], [0], [1], [0, 0, 1, 1], [], []>} : vector<16x32xf32>, vector<32x32xf32>, vector<16x32xf32> -> vector<16x32xf32>
    %c1_83 = arith.constant 1 : index
    %c0_84 = arith.constant 0 : index
    %c0_85 = arith.constant 0 : index
    %176 = vector.load %arg9[%c1_83, %c0_84, %c0_85] : memref<2x1x32xf32, #tpu.memory_space<vmem>>, vector<1x1x32xf32>
    %177 = vector.shape_cast %176 : vector<1x1x32xf32> to vector<1x32xf32>
    %178 = vector.broadcast %177 : vector<1x32xf32> to vector<16x32xf32>
    %179 = arith.addf %175, %178 : vector<16x32xf32>
    %180 = arith.addf %135, %179 : vector<16x32xf32>
    %c1_86 = arith.constant 1 : index
    %c0_87 = arith.constant 0 : index
    %c0_88 = arith.constant 0 : index
    %181 = vector.load %arg10[%c1_86, %c0_87, %c0_88] : memref<2x1x32xf32, #tpu.memory_space<vmem>>, vector<1x1x32xf32>
    %182 = vector.shape_cast %181 : vector<1x1x32xf32> to vector<1x32xf32>
    %c1_89 = arith.constant 1 : index
    %c0_90 = arith.constant 0 : index
    %c0_91 = arith.constant 0 : index
    %183 = vector.load %arg11[%c1_89, %c0_90, %c0_91] : memref<2x1x32xf32, #tpu.memory_space<vmem>>, vector<1x1x32xf32>
    %184 = vector.shape_cast %183 : vector<1x1x32xf32> to vector<1x32xf32>
    %cst_92 = arith.constant dense<0.000000e+00> : vector<16xf32>
    %185 = vector.multi_reduction <add>, %180, %cst_92 [1] : vector<16x32xf32> to vector<16xf32>
    %186 = vector.shape_cast %185 : vector<16xf32> to vector<16x1xf32>
    %cst_93 = arith.constant 3.200000e+01 : f32
    %187 = vector.broadcast %cst_93 : f32 to vector<16x1xf32>
    %188 = arith.divf %186, %187 : vector<16x1xf32>
    %189 = vector.broadcast %188 : vector<16x1xf32> to vector<16x32xf32>
    %190 = arith.subf %180, %189 : vector<16x32xf32>
    %191 = vector.broadcast %188 : vector<16x1xf32> to vector<16x32xf32>
    %192 = arith.subf %180, %191 : vector<16x32xf32>
    %193 = arith.mulf %190, %192 : vector<16x32xf32>
    %cst_94 = arith.constant dense<0.000000e+00> : vector<16xf32>
    %194 = vector.multi_reduction <add>, %193, %cst_94 [1] : vector<16x32xf32> to vector<16xf32>
    %195 = vector.shape_cast %194 : vector<16xf32> to vector<16x1xf32>
    %cst_95 = arith.constant 3.200000e+01 : f32
    %196 = vector.broadcast %cst_95 : f32 to vector<16x1xf32>
    %197 = arith.divf %195, %196 : vector<16x1xf32>
    %198 = vector.broadcast %188 : vector<16x1xf32> to vector<16x32xf32>
    %199 = arith.subf %180, %198 : vector<16x32xf32>
    %cst_96 = arith.constant 9.99999974E-6 : f32
    %200 = vector.broadcast %cst_96 : f32 to vector<16x1xf32>
    %201 = arith.addf %197, %200 : vector<16x1xf32>
    %202 = math.rsqrt %201 : vector<16x1xf32>
    %203 = vector.broadcast %202 : vector<16x1xf32> to vector<16x32xf32>
    %204 = arith.mulf %199, %203 : vector<16x32xf32>
    %205 = vector.broadcast %182 : vector<1x32xf32> to vector<16x32xf32>
    %206 = arith.mulf %204, %205 : vector<16x32xf32>
    %207 = vector.broadcast %184 : vector<1x32xf32> to vector<16x32xf32>
    %208 = arith.addf %206, %207 : vector<16x32xf32>
    %c1_97 = arith.constant 1 : index
    %c0_98 = arith.constant 0 : index
    %c0_99 = arith.constant 0 : index
    %209 = vector.load %arg12[%c1_97, %c0_98, %c0_99] : memref<2x32x128xf32, #tpu.memory_space<vmem>>, vector<1x32x128xf32>
    %210 = vector.shape_cast %209 : vector<1x32x128xf32> to vector<32x128xf32>
    %cst_100 = arith.constant dense<0.000000e+00> : vector<16x128xf32>
    %211 = tpu.matmul %208, %210, %cst_100 {dimension_numbers = #tpu.dot_dimension_numbers<[1], [0], [0], [1], [0, 0, 1, 1], [], []>} : vector<16x32xf32>, vector<32x128xf32>, vector<16x128xf32> -> vector<16x128xf32>
    %c1_101 = arith.constant 1 : index
    %c0_102 = arith.constant 0 : index
    %c0_103 = arith.constant 0 : index
    %212 = vector.load %arg13[%c1_101, %c0_102, %c0_103] : memref<2x1x128xf32, #tpu.memory_space<vmem>>, vector<1x1x128xf32>
    %213 = vector.shape_cast %212 : vector<1x1x128xf32> to vector<1x128xf32>
    %214 = vector.broadcast %213 : vector<1x128xf32> to vector<16x128xf32>
    %215 = arith.addf %211, %214 : vector<16x128xf32>
    %cst_104 = arith.constant 5.000000e-01 : f32
    %216 = vector.broadcast %cst_104 : f32 to vector<16x128xf32>
    %217 = arith.mulf %216, %215 : vector<16x128xf32>
    %cst_105 = arith.constant 4.471500e-02 : f32
    %218 = vector.broadcast %cst_105 : f32 to vector<16x128xf32>
    %219 = arith.mulf %218, %215 : vector<16x128xf32>
    %220 = arith.mulf %219, %215 : vector<16x128xf32>
    %221 = arith.mulf %220, %215 : vector<16x128xf32>
    %222 = arith.addf %215, %221 : vector<16x128xf32>
    %cst_106 = arith.constant 0.797884583 : f32
    %223 = vector.broadcast %cst_106 : f32 to vector<16x128xf32>
    %224 = arith.mulf %223, %222 : vector<16x128xf32>
    %225 = math.tanh %224 : vector<16x128xf32>
    %cst_107 = arith.constant 1.000000e+00 : f32
    %226 = vector.broadcast %cst_107 : f32 to vector<16x128xf32>
    %227 = arith.addf %226, %225 : vector<16x128xf32>
    %228 = arith.mulf %217, %227 : vector<16x128xf32>
    %c1_108 = arith.constant 1 : index
    %c0_109 = arith.constant 0 : index
    %c0_110 = arith.constant 0 : index
    %229 = vector.load %arg14[%c1_108, %c0_109, %c0_110] : memref<2x128x32xf32, #tpu.memory_space<vmem>>, vector<1x128x32xf32>
    %230 = vector.shape_cast %229 : vector<1x128x32xf32> to vector<128x32xf32>
    %cst_111 = arith.constant dense<0.000000e+00> : vector<16x32xf32>
    %231 = tpu.matmul %228, %230, %cst_111 {dimension_numbers = #tpu.dot_dimension_numbers<[1], [0], [0], [1], [0, 0, 1, 1], [], []>} : vector<16x128xf32>, vector<128x32xf32>, vector<16x32xf32> -> vector<16x32xf32>
    %c1_112 = arith.constant 1 : index
    %c0_113 = arith.constant 0 : index
    %c0_114 = arith.constant 0 : index
    %232 = vector.load %arg15[%c1_112, %c0_113, %c0_114] : memref<2x1x32xf32, #tpu.memory_space<vmem>>, vector<1x1x32xf32>
    %233 = vector.shape_cast %232 : vector<1x1x32xf32> to vector<1x32xf32>
    %234 = vector.broadcast %233 : vector<1x32xf32> to vector<16x32xf32>
    %235 = arith.addf %231, %234 : vector<16x32xf32>
    %236 = arith.addf %208, %235 : vector<16x32xf32>
    %c1_115 = arith.constant 1 : index
    %c0_116 = arith.constant 0 : index
    %c0_117 = arith.constant 0 : index
    %237 = vector.load %arg16[%c1_115, %c0_116, %c0_117] : memref<2x1x32xf32, #tpu.memory_space<vmem>>, vector<1x1x32xf32>
    %238 = vector.shape_cast %237 : vector<1x1x32xf32> to vector<1x32xf32>
    %c1_118 = arith.constant 1 : index
    %c0_119 = arith.constant 0 : index
    %c0_120 = arith.constant 0 : index
    %239 = vector.load %arg17[%c1_118, %c0_119, %c0_120] : memref<2x1x32xf32, #tpu.memory_space<vmem>>, vector<1x1x32xf32>
    %240 = vector.shape_cast %239 : vector<1x1x32xf32> to vector<1x32xf32>
    %cst_121 = arith.constant dense<0.000000e+00> : vector<16xf32>
    %241 = vector.multi_reduction <add>, %236, %cst_121 [1] : vector<16x32xf32> to vector<16xf32>
    %242 = vector.shape_cast %241 : vector<16xf32> to vector<16x1xf32>
    %cst_122 = arith.constant 3.200000e+01 : f32
    %243 = vector.broadcast %cst_122 : f32 to vector<16x1xf32>
    %244 = arith.divf %242, %243 : vector<16x1xf32>
    %245 = vector.broadcast %244 : vector<16x1xf32> to vector<16x32xf32>
    %246 = arith.subf %236, %245 : vector<16x32xf32>
    %247 = vector.broadcast %244 : vector<16x1xf32> to vector<16x32xf32>
    %248 = arith.subf %236, %247 : vector<16x32xf32>
    %249 = arith.mulf %246, %248 : vector<16x32xf32>
    %cst_123 = arith.constant dense<0.000000e+00> : vector<16xf32>
    %250 = vector.multi_reduction <add>, %249, %cst_123 [1] : vector<16x32xf32> to vector<16xf32>
    %251 = vector.shape_cast %250 : vector<16xf32> to vector<16x1xf32>
    %cst_124 = arith.constant 3.200000e+01 : f32
    %252 = vector.broadcast %cst_124 : f32 to vector<16x1xf32>
    %253 = arith.divf %251, %252 : vector<16x1xf32>
    %254 = vector.broadcast %244 : vector<16x1xf32> to vector<16x32xf32>
    %255 = arith.subf %236, %254 : vector<16x32xf32>
    %cst_125 = arith.constant 9.99999974E-6 : f32
    %256 = vector.broadcast %cst_125 : f32 to vector<16x1xf32>
    %257 = arith.addf %253, %256 : vector<16x1xf32>
    %258 = math.rsqrt %257 : vector<16x1xf32>
    %259 = vector.broadcast %258 : vector<16x1xf32> to vector<16x32xf32>
    %260 = arith.mulf %255, %259 : vector<16x32xf32>
    %261 = vector.broadcast %238 : vector<1x32xf32> to vector<16x32xf32>
    %262 = arith.mulf %260, %261 : vector<16x32xf32>
    %263 = vector.broadcast %240 : vector<1x32xf32> to vector<16x32xf32>
    %264 = arith.addf %262, %263 : vector<16x32xf32>
    %265 = vector.extract_strided_slice %264 {offsets = [0, 0], sizes = [2, 32], strides = [1, 1]} : vector<16x32xf32> to vector<2x32xf32>
    %c0_126 = arith.constant 0 : index
    %c0_127 = arith.constant 0 : index
    %266 = vector.load %arg18[%c0_126, %c0_127] : memref<1x32xf32, #tpu.memory_space<vmem>>, vector<1x32xf32>
    %c0_128 = arith.constant 0 : index
    %c0_129 = arith.constant 0 : index
    %267 = vector.load %arg19[%c0_128, %c0_129] : memref<1x32xf32, #tpu.memory_space<vmem>>, vector<1x32xf32>
    %cst_130 = arith.constant dense<0.000000e+00> : vector<2xf32>
    %268 = vector.multi_reduction <add>, %265, %cst_130 [1] : vector<2x32xf32> to vector<2xf32>
    %269 = vector.shape_cast %268 : vector<2xf32> to vector<2x1xf32>
    %cst_131 = arith.constant 3.200000e+01 : f32
    %270 = vector.broadcast %cst_131 : f32 to vector<2x1xf32>
    %271 = arith.divf %269, %270 : vector<2x1xf32>
    %272 = vector.broadcast %271 : vector<2x1xf32> to vector<2x32xf32>
    %273 = arith.subf %265, %272 : vector<2x32xf32>
    %274 = vector.broadcast %271 : vector<2x1xf32> to vector<2x32xf32>
    %275 = arith.subf %265, %274 : vector<2x32xf32>
    %276 = arith.mulf %273, %275 : vector<2x32xf32>
    %cst_132 = arith.constant dense<0.000000e+00> : vector<2xf32>
    %277 = vector.multi_reduction <add>, %276, %cst_132 [1] : vector<2x32xf32> to vector<2xf32>
    %278 = vector.shape_cast %277 : vector<2xf32> to vector<2x1xf32>
    %cst_133 = arith.constant 3.200000e+01 : f32
    %279 = vector.broadcast %cst_133 : f32 to vector<2x1xf32>
    %280 = arith.divf %278, %279 : vector<2x1xf32>
    %281 = vector.broadcast %271 : vector<2x1xf32> to vector<2x32xf32>
    %282 = arith.subf %265, %281 : vector<2x32xf32>
    %cst_134 = arith.constant 9.99999974E-6 : f32
    %283 = vector.broadcast %cst_134 : f32 to vector<2x1xf32>
    %284 = arith.addf %280, %283 : vector<2x1xf32>
    %285 = math.rsqrt %284 : vector<2x1xf32>
    %286 = vector.broadcast %285 : vector<2x1xf32> to vector<2x32xf32>
    %287 = arith.mulf %282, %286 : vector<2x32xf32>
    %288 = vector.broadcast %266 : vector<1x32xf32> to vector<2x32xf32>
    %289 = arith.mulf %287, %288 : vector<2x32xf32>
    %290 = vector.broadcast %267 : vector<1x32xf32> to vector<2x32xf32>
    %291 = arith.addf %289, %290 : vector<2x32xf32>
    %c0_135 = arith.constant 0 : index
    %c0_136 = arith.constant 0 : index
    %292 = vector.load %arg20[%c0_135, %c0_136] : memref<32x16xf32, #tpu.memory_space<vmem>>, vector<32x16xf32>
    %cst_137 = arith.constant dense<0.000000e+00> : vector<2x16xf32>
    %293 = tpu.matmul %291, %292, %cst_137 {dimension_numbers = #tpu.dot_dimension_numbers<[1], [0], [0], [1], [0, 0, 1, 1], [], []>} : vector<2x32xf32>, vector<32x16xf32>, vector<2x16xf32> -> vector<2x16xf32>
    %c0_138 = arith.constant 0 : index
    %c0_139 = arith.constant 0 : index
    %294 = vector.load %arg21[%c0_138, %c0_139] : memref<1x16xf32, #tpu.memory_space<vmem>>, vector<1x16xf32>
    %295 = vector.broadcast %294 : vector<1x16xf32> to vector<2x16xf32>
    %296 = arith.addf %293, %295 : vector<2x16xf32>
    %cst_140 = arith.constant 5.000000e-01 : f32
    %297 = vector.broadcast %cst_140 : f32 to vector<2x16xf32>
    %298 = arith.mulf %297, %296 : vector<2x16xf32>
    %cst_141 = arith.constant 4.471500e-02 : f32
    %299 = vector.broadcast %cst_141 : f32 to vector<2x16xf32>
    %300 = arith.mulf %299, %296 : vector<2x16xf32>
    %301 = arith.mulf %300, %296 : vector<2x16xf32>
    %302 = arith.mulf %301, %296 : vector<2x16xf32>
    %303 = arith.addf %296, %302 : vector<2x16xf32>
    %cst_142 = arith.constant 0.797884583 : f32
    %304 = vector.broadcast %cst_142 : f32 to vector<2x16xf32>
    %305 = arith.mulf %304, %303 : vector<2x16xf32>
    %306 = math.tanh %305 : vector<2x16xf32>
    %cst_143 = arith.constant 1.000000e+00 : f32
    %307 = vector.broadcast %cst_143 : f32 to vector<2x16xf32>
    %308 = arith.addf %307, %306 : vector<2x16xf32>
    %309 = arith.mulf %298, %308 : vector<2x16xf32>
    %c0_144 = arith.constant 0 : index
    %c0_145 = arith.constant 0 : index
    %310 = vector.load %arg22[%c0_144, %c0_145] : memref<16x128xf32, #tpu.memory_space<vmem>>, vector<16x128xf32>
    %cst_146 = arith.constant dense<0.000000e+00> : vector<2x128xf32>
    %311 = tpu.matmul %309, %310, %cst_146 {dimension_numbers = #tpu.dot_dimension_numbers<[1], [0], [0], [1], [0, 0, 1, 1], [], []>} : vector<2x16xf32>, vector<16x128xf32>, vector<2x128xf32> -> vector<2x128xf32>
    %c0_147 = arith.constant 0 : index
    %c0_148 = arith.constant 0 : index
    %312 = vector.load %arg23[%c0_147, %c0_148] : memref<1x128xf32, #tpu.memory_space<vmem>>, vector<1x128xf32>
    %313 = vector.broadcast %312 : vector<1x128xf32> to vector<2x128xf32>
    %314 = arith.addf %311, %313 : vector<2x128xf32>
    %c0_149 = arith.constant 0 : index
    %c0_150 = arith.constant 0 : index
    %315 = vector.load %arg24[%c0_149, %c0_150] : memref<2x128xf32, #tpu.memory_space<vmem>>, vector<2x128xf32>
    tpu.vector_store %arg24[%c0_149, %c0_150], %314 {strides = array<i32>} : memref<2x128xf32, #tpu.memory_space<vmem>>, vector<2x128xf32>,
    return
  }
  func.func @transform_0(%arg0: i32) -> (i32, i32) {
    %c0_i32 = arith.constant 0 : i32
    %c0_i32_0 = arith.constant 0 : i32
    %c0_i32_1 = arith.constant 0 : i32
    return %c0_i32, %c0_i32_0 : i32, i32
  }
  func.func @transform_1(%arg0: i32) -> (i32, i32) {
    %c0_i32 = arith.constant 0 : i32
    %c0_i32_0 = arith.constant 0 : i32
    %c0_i32_1 = arith.constant 0 : i32
    return %c0_i32, %c0_i32_0 : i32, i32
  }
  func.func @transform_2(%arg0: i32) -> (i32, i32) {
    %c0_i32 = arith.constant 0 : i32
    %c0_i32_0 = arith.constant 0 : i32
    %c0_i32_1 = arith.constant 0 : i32
    return %c0_i32, %c0_i32_0 : i32, i32
  }
  func.func @transform_3(%arg0: i32) -> (i32, i32) {
    %c0_i32 = arith.constant 0 : i32
    %c0_i32_0 = arith.constant 0 : i32
    %c0_i32_1 = arith.constant 0 : i32
    return %c0_i32, %c0_i32_0 : i32, i32
  }
  func.func @transform_4(%arg0: i32) -> (i32, i32) {
    %c0_i32 = arith.constant 0 : i32
    %c0_i32_0 = arith.constant 0 : i32
    %c0_i32_1 = arith.constant 0 : i32
    return %c0_i32, %c0_i32_0 : i32, i32
  }
  func.func @transform_5(%arg0: i32) -> (i32, i32, i32) {
    %c0_i32 = arith.constant 0 : i32
    %c0_i32_0 = arith.constant 0 : i32
    %c0_i32_1 = arith.constant 0 : i32
    %c0_i32_2 = arith.constant 0 : i32
    return %c0_i32, %c0_i32_0, %c0_i32_1 : i32, i32, i32
  }
  func.func @transform_6(%arg0: i32) -> (i32, i32, i32) {
    %c0_i32 = arith.constant 0 : i32
    %c0_i32_0 = arith.constant 0 : i32
    %c0_i32_1 = arith.constant 0 : i32
    %c0_i32_2 = arith.constant 0 : i32
    return %c0_i32, %c0_i32_0, %c0_i32_1 : i32, i32, i32
  }
  func.func @transform_7(%arg0: i32) -> (i32, i32, i32) {
    %c0_i32 = arith.constant 0 : i32
    %c0_i32_0 = arith.constant 0 : i32
    %c0_i32_1 = arith.constant 0 : i32
    %c0_i32_2 = arith.constant 0 : i32
    return %c0_i32, %c0_i32_0, %c0_i32_1 : i32, i32, i32
  }
  func.func @transform_8(%arg0: i32) -> (i32, i32, i32) {
    %c0_i32 = arith.constant 0 : i32
    %c0_i32_0 = arith.constant 0 : i32
    %c0_i32_1 = arith.constant 0 : i32
    %c0_i32_2 = arith.constant 0 : i32
    return %c0_i32, %c0_i32_0, %c0_i32_1 : i32, i32, i32
  }
  func.func @transform_9(%arg0: i32) -> (i32, i32, i32) {
    %c0_i32 = arith.constant 0 : i32
    %c0_i32_0 = arith.constant 0 : i32
    %c0_i32_1 = arith.constant 0 : i32
    %c0_i32_2 = arith.constant 0 : i32
    return %c0_i32, %c0_i32_0, %c0_i32_1 : i32, i32, i32
  }
  func.func @transform_10(%arg0: i32) -> (i32, i32, i32) {
    %c0_i32 = arith.constant 0 : i32
    %c0_i32_0 = arith.constant 0 : i32
    %c0_i32_1 = arith.constant 0 : i32
    %c0_i32_2 = arith.constant 0 : i32
    return %c0_i32, %c0_i32_0, %c0_i32_1 : i32, i32, i32
  }
  func.func @transform_11(%arg0: i32) -> (i32, i32, i32) {
    %c0_i32 = arith.constant 0 : i32
    %c0_i32_0 = arith.constant 0 : i32
    %c0_i32_1 = arith.constant 0 : i32
    %c0_i32_2 = arith.constant 0 : i32
    return %c0_i32, %c0_i32_0, %c0_i32_1 : i32, i32, i32
  }
  func.func @transform_12(%arg0: i32) -> (i32, i32, i32) {
    %c0_i32 = arith.constant 0 : i32
    %c0_i32_0 = arith.constant 0 : i32
    %c0_i32_1 = arith.constant 0 : i32
    %c0_i32_2 = arith.constant 0 : i32
    return %c0_i32, %c0_i32_0, %c0_i32_1 : i32, i32, i32
  }
  func.func @transform_13(%arg0: i32) -> (i32, i32, i32) {
    %c0_i32 = arith.constant 0 : i32
    %c0_i32_0 = arith.constant 0 : i32
    %c0_i32_1 = arith.constant 0 : i32
    %c0_i32_2 = arith.constant 0 : i32
    return %c0_i32, %c0_i32_0, %c0_i32_1 : i32, i32, i32
  }
  func.func @transform_14(%arg0: i32) -> (i32, i32, i32) {
    %c0_i32 = arith.constant 0 : i32
    %c0_i32_0 = arith.constant 0 : i32
    %c0_i32_1 = arith.constant 0 : i32
    %c0_i32_2 = arith.constant 0 : i32
    return %c0_i32, %c0_i32_0, %c0_i32_1 : i32, i32, i32
  }
  func.func @transform_15(%arg0: i32) -> (i32, i32, i32) {
    %c0_i32 = arith.constant 0 : i32
    %c0_i32_0 = arith.constant 0 : i32
    %c0_i32_1 = arith.constant 0 : i32
    %c0_i32_2 = arith.constant 0 : i32
    return %c0_i32, %c0_i32_0, %c0_i32_1 : i32, i32, i32
  }
  func.func @transform_16(%arg0: i32) -> (i32, i32, i32) {
    %c0_i32 = arith.constant 0 : i32
    %c0_i32_0 = arith.constant 0 : i32
    %c0_i32_1 = arith.constant 0 : i32
    %c0_i32_2 = arith.constant 0 : i32
    return %c0_i32, %c0_i32_0, %c0_i32_1 : i32, i32, i32
  }
  func.func @transform_17(%arg0: i32) -> (i32, i32) {
    %c0_i32 = arith.constant 0 : i32
    %c0_i32_0 = arith.constant 0 : i32
    %c0_i32_1 = arith.constant 0 : i32
    return %c0_i32, %c0_i32_0 : i32, i32
  }
  func.func @transform_18(%arg0: i32) -> (i32, i32) {
    %c0_i32 = arith.constant 0 : i32
    %c0_i32_0 = arith.constant 0 : i32
    %c0_i32_1 = arith.constant 0 : i32
    return %c0_i32, %c0_i32_0 : i32, i32
  }
  func.func @transform_19(%arg0: i32) -> (i32, i32) {
    %c0_i32 = arith.constant 0 : i32
    %c0_i32_0 = arith.constant 0 : i32
    %c0_i32_1 = arith.constant 0 : i32
    return %c0_i32, %c0_i32_0 : i32, i32
  }
  func.func @transform_20(%arg0: i32) -> (i32, i32) {
    %c0_i32 = arith.constant 0 : i32
    %c0_i32_0 = arith.constant 0 : i32
    %c0_i32_1 = arith.constant 0 : i32
    return %c0_i32, %c0_i32_0 : i32, i32
  }
  func.func @transform_21(%arg0: i32) -> (i32, i32) {
    %c0_i32 = arith.constant 0 : i32
    %c0_i32_0 = arith.constant 0 : i32
    %c0_i32_1 = arith.constant 0 : i32
    return %c0_i32, %c0_i32_0 : i32, i32
  }
  func.func @transform_22(%arg0: i32) -> (i32, i32) {
    %c0_i32 = arith.constant 0 : i32
    %c0_i32_0 = arith.constant 0 : i32
    %c0_i32_1 = arith.constant 0 : i32
    return %c0_i32, %c0_i32_0 : i32, i32
  }
  func.func @transform_23(%arg0: i32) -> (i32, i32) {
    %c0_i32 = arith.constant 0 : i32
    %c0_i32_0 = arith.constant 0 : i32
    %c0_i32_1 = arith.constant 0 : i32
    return %c0_i32, %c0_i32_0 : i32, i32
  }
}

</mosaic_0001>

<llo_original>
// kernel: tpu_custom_call.1
$region0: #{tpu_custom_call.1}
  #allocation0 [shape = 'u32[]', space=smem, size = 0x4, offset = 0x4, fixed_abs, tag = 'smem constant byte address 0x4 - core index']
  #allocation1 [shape = 'u32[144,128]{1,0:T(1,128)}', space=vmem, size = 0x12000, scoped, tag = 'internal scratch']
  %s0 = inlined_call_operand.vmem [shape: f32[16,32], index: 0, kind: input, shape index: {}]
  %s1 = inlined_call_operand.vmem [shape: f32[16,32], index: 1, kind: input, shape index: {}]
  %s2 = inlined_call_operand.vmem [shape: f32[64,64], index: 2, kind: input, shape index: {}]
  %s3 = inlined_call_operand.vmem [shape: f32[64,32], index: 3, kind: input, shape index: {}]
  %s4 = inlined_call_operand.vmem [shape: f32[32,32], index: 4, kind: input, shape index: {}]
  %s5 = inlined_call_operand.vmem [shape: f32[2,32,96], index: 5, kind: input, shape index: {}]
  %s6 = inlined_call_operand.vmem [shape: f32[2,1,96], index: 6, kind: input, shape index: {}]
  %s7 = inlined_call_operand.vmem [shape: f32[2,32,32], index: 7, kind: input, shape index: {}]
  %s8 = inlined_call_operand.vmem [shape: f32[2,1,32], index: 8, kind: input, shape index: {}]
  %s9 = inlined_call_operand.vmem [shape: f32[2,1,32], index: 9, kind: input, shape index: {}]
  %s10 = inlined_call_operand.vmem [shape: f32[2,1,32], index: 10, kind: input, shape index: {}]
  %s11 = inlined_call_operand.vmem [shape: f32[2,32,128], index: 11, kind: input, shape index: {}]
  %s12 = inlined_call_operand.vmem [shape: f32[2,1,128], index: 12, kind: input, shape index: {}]
  %s13 = inlined_call_operand.vmem [shape: f32[2,128,32], index: 13, kind: input, shape index: {}]
  %s14 = inlined_call_operand.vmem [shape: f32[2,1,32], index: 14, kind: input, shape index: {}]
  %s15 = inlined_call_operand.vmem [shape: f32[2,1,32], index: 15, kind: input, shape index: {}]
  %s16 = inlined_call_operand.vmem [shape: f32[2,1,32], index: 16, kind: input, shape index: {}]
  %s17 = inlined_call_operand.vmem [shape: f32[1,32], index: 17, kind: input, shape index: {}]
  %s18 = inlined_call_operand.vmem [shape: f32[1,32], index: 18, kind: input, shape index: {}]
  %s19 = inlined_call_operand.vmem [shape: f32[32,16], index: 19, kind: input, shape index: {}]
  %s20 = inlined_call_operand.vmem [shape: f32[1,16], index: 20, kind: input, shape index: {}]
  %s21 = inlined_call_operand.vmem [shape: f32[16,128], index: 21, kind: input, shape index: {}]
  %s22 = inlined_call_operand.vmem [shape: f32[1,128], index: 22, kind: input, shape index: {}]
  %s23 = inlined_call_operand.hbm [shape: f32[2,128], index: 23, kind: output, shape index: {}]
  %s24 = sld [smem:[#allocation0]]
  $region102: #{tpu_custom_call.1} parent=0
    _
  %s26 = ssub.s32 1, %s24
  %s27 = scalar_select 0, %s26, %s24
  $region1: #{tpu_custom_call.1} parent=0
    #allocation2 [shape = 'u8[1024]{0}', space=vmem, size = 0x400, scoped, tag = 'output window, operand 0, single buffered']
    #allocation3 [shape = 's32[1]{0}', space=sflag, size = 0x4, scoped, tag = 'scoped memory for tpu_custom_call.1']
    %28 = vsyncpa [#allocation3], 0
    // Predicated region
    $region2: #{tpu_custom_call.1} parent=1 // pred_check
      _
    $region3: #{tpu_custom_call.1} parent=1 // pred_check_branch
      %30 = sbr.rel (0) target = $region5
    $region4: #{tpu_custom_call.1} parent=1 // pred_region
      _
    $region5: #{tpu_custom_call.1} parent=1 // pred_fallthru
      _
    // Predicated region
    $region6: #{tpu_custom_call.1} parent=1 // pred_check
      _
    $region7: #{tpu_custom_call.1} parent=1 // pred_check_branch
      %32 = sbr.rel (0) target = $region9
    $region8: #{tpu_custom_call.1} parent=1 // pred_region
      _
    $region9: #{tpu_custom_call.1} parent=1 // pred_fallthru
      _
    // Predicated region
    $region10: #{tpu_custom_call.1} parent=1 // pred_check
      _
    $region11: #{tpu_custom_call.1} parent=1 // pred_check_branch
      %34 = sbr.rel (0) target = $region13
    $region12: #{tpu_custom_call.1} parent=1 // pred_region
      _
    $region13: #{tpu_custom_call.1} parent=1 // pred_fallthru
      _
    // Predicated region
    $region14: #{tpu_custom_call.1} parent=1 // pred_check
      _
    $region15: #{tpu_custom_call.1} parent=1 // pred_check_branch
      %36 = sbr.rel (0) target = $region17
    $region16: #{tpu_custom_call.1} parent=1 // pred_region
      _
    $region17: #{tpu_custom_call.1} parent=1 // pred_fallthru
      _
    // Predicated region
    $region18: #{tpu_custom_call.1} parent=1 // pred_check
      _
    $region19: #{tpu_custom_call.1} parent=1 // pred_check_branch
      %38 = sbr.rel (0) target = $region21
    $region20: #{tpu_custom_call.1} parent=1 // pred_region
      _
    $region21: #{tpu_custom_call.1} parent=1 // pred_fallthru
      _
    // Predicated region
    $region22: #{tpu_custom_call.1} parent=1 // pred_check
      _
    $region23: #{tpu_custom_call.1} parent=1 // pred_check_branch
      %40 = sbr.rel (0) target = $region25
    $region24: #{tpu_custom_call.1} parent=1 // pred_region
      _
    $region25: #{tpu_custom_call.1} parent=1 // pred_fallthru
      _
    // Predicated region
    $region26: #{tpu_custom_call.1} parent=1 // pred_check
      _
    $region27: #{tpu_custom_call.1} parent=1 // pred_check_branch
      %42 = sbr.rel (0) target = $region29
    $region28: #{tpu_custom_call.1} parent=1 // pred_region
      _
    $region29: #{tpu_custom_call.1} parent=1 // pred_fallthru
      _
    // Predicated region
    $region30: #{tpu_custom_call.1} parent=1 // pred_check
      _
    $region31: #{tpu_custom_call.1} parent=1 // pred_check_branch
      %44 = sbr.rel (0) target = $region33
    $region32: #{tpu_custom_call.1} parent=1 // pred_region
      _
    $region33: #{tpu_custom_call.1} parent=1 // pred_fallthru
      _
    // Predicated region
    $region34: #{tpu_custom_call.1} parent=1 // pred_check
      _
    $region35: #{tpu_custom_call.1} parent=1 // pred_check_branch
      %46 = sbr.rel (0) target = $region37
    $region36: #{tpu_custom_call.1} parent=1 // pred_region
      _
    $region37: #{tpu_custom_call.1} parent=1 // pred_fallthru
      _
    // Predicated region
    $region38: #{tpu_custom_call.1} parent=1 // pred_check
      _
    $region39: #{tpu_custom_call.1} parent=1 // pred_check_branch
      %48 = sbr.rel (0) target = $region41
    $region40: #{tpu_custom_call.1} parent=1 // pred_region
      _
    $region41: #{tpu_custom_call.1} parent=1 // pred_fallthru
      _
    // Predicated region
    $region42: #{tpu_custom_call.1} parent=1 // pred_check
      _
    $region43: #{tpu_custom_call.1} parent=1 // pred_check_branch
      %50 = sbr.rel (0) target = $region45
    $region44: #{tpu_custom_call.1} parent=1 // pred_region
      _
    $region45: #{tpu_custom_call.1} parent=1 // pred_fallthru
      _
    // Predicated region
    $region46: #{tpu_custom_call.1} parent=1 // pred_check
      _
    $region47: #{tpu_custom_call.1} parent=1 // pred_check_branch
      %52 = sbr.rel (0) target = $region49
    $region48: #{tpu_custom_call.1} parent=1 // pred_region
      _
    $region49: #{tpu_custom_call.1} parent=1 // pred_fallthru
      _
    // Predicated region
    $region50: #{tpu_custom_call.1} parent=1 // pred_check
      _
    $region51: #{tpu_custom_call.1} parent=1 // pred_check_branch
      %54 = sbr.rel (0) target = $region53
    $region52: #{tpu_custom_call.1} parent=1 // pred_region
      _
    $region53: #{tpu_custom_call.1} parent=1 // pred_fallthru
      _
    // Predicated region
    $region54: #{tpu_custom_call.1} parent=1 // pred_check
      _
    $region55: #{tpu_custom_call.1} parent=1 // pred_check_branch
      %56 = sbr.rel (0) target = $region57
    $region56: #{tpu_custom_call.1} parent=1 // pred_region
      _
    $region57: #{tpu_custom_call.1} parent=1 // pred_fallthru
      _
    // Predicated region
    $region58: #{tpu_custom_call.1} parent=1 // pred_check
      _
    $region59: #{tpu_custom_call.1} parent=1 // pred_check_branch
      %58 = sbr.rel (0) target = $region61
    $region60: #{tpu_custom_call.1} parent=1 // pred_region
      _
    $region61: #{tpu_custom_call.1} parent=1 // pred_fallthru
      _
    // Predicated region
    $region62: #{tpu_custom_call.1} parent=1 // pred_check
      _
    $region63: #{tpu_custom_call.1} parent=1 // pred_check_branch
      %60 = sbr.rel (0) target = $region65
    $region64: #{tpu_custom_call.1} parent=1 // pred_region
      _
    $region65: #{tpu_custom_call.1} parent=1 // pred_fallthru
      _
    // Predicated region
    $region66: #{tpu_custom_call.1} parent=1 // pred_check
      _
    $region67: #{tpu_custom_call.1} parent=1 // pred_check_branch
      %62 = sbr.rel (0) target = $region69
    $region68: #{tpu_custom_call.1} parent=1 // pred_region
      _
    $region69: #{tpu_custom_call.1} parent=1 // pred_fallthru
      _
    // Predicated region
    $region70: #{tpu_custom_call.1} parent=1 // pred_check
      _
    $region71: #{tpu_custom_call.1} parent=1 // pred_check_branch
      %64 = sbr.rel (0) target = $region73
    $region72: #{tpu_custom_call.1} parent=1 // pred_region
      _
    $region73: #{tpu_custom_call.1} parent=1 // pred_fallthru
      _
    // Predicated region
    $region74: #{tpu_custom_call.1} parent=1 // pred_check
      _
    $region75: #{tpu_custom_call.1} parent=1 // pred_check_branch
      %66 = sbr.rel (0) target = $region77
    $region76: #{tpu_custom_call.1} parent=1 // pred_region
      _
    $region77: #{tpu_custom_call.1} parent=1 // pred_fallthru
      _
    // Predicated region
    $region78: #{tpu_custom_call.1} parent=1 // pred_check
      _
    $region79: #{tpu_custom_call.1} parent=1 // pred_check_branch
      %68 = sbr.rel (0) target = $region81
    $region80: #{tpu_custom_call.1} parent=1 // pred_region
      _
    $region81: #{tpu_custom_call.1} parent=1 // pred_fallthru
      _
    // Predicated region
    $region82: #{tpu_custom_call.1} parent=1 // pred_check
      _
    $region83: #{tpu_custom_call.1} parent=1 // pred_check_branch
      %70 = sbr.rel (0) target = $region85
    $region84: #{tpu_custom_call.1} parent=1 // pred_region
      _
    $region85: #{tpu_custom_call.1} parent=1 // pred_fallthru
      _
    // Predicated region
    $region86: #{tpu_custom_call.1} parent=1 // pred_check
      _
    $region87: #{tpu_custom_call.1} parent=1 // pred_check_branch
      %72 = sbr.rel (0) target = $region89
    $region88: #{tpu_custom_call.1} parent=1 // pred_region
      _
    $region89: #{tpu_custom_call.1} parent=1 // pred_fallthru
      _
    // Predicated region
    $region90: #{tpu_custom_call.1} parent=1 // pred_check
      _
    $region91: #{tpu_custom_call.1} parent=1 // pred_check_branch
      %74 = sbr.rel (0) target = $region93
    $region92: #{tpu_custom_call.1} parent=1 // pred_region
      _
    $region93: #{tpu_custom_call.1} parent=1 // pred_fallthru
      _
    %v75 = vld [vmem:[%s0] sm:$0xff]
    %v76 = vld [vmem:[%s0 + $0x8] sm:$0xff]
    %v77 = vld [vmem:[%s4] sm:$0xff]
    %v78 = vld [vmem:[%s4 + $0x8] sm:$0xff]
    %v79 = vld [vmem:[%s4 + $0x10] sm:$0xff]
    %v80 = vld [vmem:[%s4 + $0x18] sm:$0xff]
    %v81 = vld [vmem:[%s1] sm:$0xff]
    %v82 = vld [vmem:[%s1 + $0x8] sm:$0xff]
    %vm83 = vcmask 261120
    %v85 = vsel %vm83, %v75, 0
    %v88 = vsel %vm83, %v76, 0
    %90 = vmatprep.subr.mxu0 0.0
    %91 = vmatpush1.msra.mxu0 %v77
    %92 = vmatprep.subr.mxu0 0.0
    %93 = vmatpush1.msra.mxu0 %v78
    %94 = vmatprep.subr.mxu0 0.0
    %95 = vmatpush1.msra.mxu0 %v79
    %96 = vmatprep.subr.mxu0 0.0
    %97 = vmatpush1.msra.mxu0 %v80
    %98 = vmatprep.subr.mxu0 0.0
    %99 = vmatpush1.msra.mxu0 0.0
    %100 = vmatprep.subr.mxu0 0.0
    %101 = vmatpush1.msra.mxu0 0.0
    %102 = vmatprep.subr.mxu0 0.0
    %103 = vmatpush1.msra.mxu0 0.0
    %104 = vmatprep.subr.mxu0 0.0
    %105 = vmatpush1.msra.mxu0 0.0
    %106 = vmatprep.subr.mxu0 0.0
    %107 = vmatpush1.msra.mxu0 0.0
    %108 = vmatprep.subr.mxu0 0.0
    %109 = vmatpush1.msra.mxu0 0.0
    %110 = vmatprep.subr.mxu0 0.0
    %111 = vmatpush1.msra.mxu0 0.0
    %112 = vmatprep.subr.mxu0 0.0
    %113 = vmatpush1.msra.mxu0 0.0
    %114 = vmatprep.subr.mxu0 0.0
    %115 = vmatpush1.msra.mxu0 0.0
    %116 = vmatprep.subr.mxu0 0.0
    %117 = vmatpush1.msra.mxu0 0.0
    %118 = vmatprep.subr.mxu0 0.0
    %119 = vmatpush1.msra.mxu0 0.0
    %120 = vmatprep.subr.mxu0 0.0
    %121 = vmatpush1.msra.mxu0 0.0
    %122 = vmatprep.subr.mxu0 0.0
    %123 = vmatpush1.msra.mxu0 0.0
    %124 = vmatprep.subr.mxu0 0.0
    %125 = vmatpush1.msra.mxu0 0.0
    %126 = vmatprep.subr.mxu0 0.0
    %127 = vmatpush1.msra.mxu0 0.0
    %128 = vmatprep.subr.mxu0 0.0
    %129 = vmatpush1.msra.mxu0 0.0
    %130 = vmatprep.subr.mxu0 0.0
    %131 = vmatpush1.msra.mxu0 0.0
    %132 = vmatprep.subr.mxu0 0.0
    %133 = vmatpush1.msra.mxu0 0.0
    %134 = vmatprep.subr.mxu0 0.0
    %135 = vmatpush1.msra.mxu0 0.0
    %136 = vmatprep.subr.mxu0 0.0
    %137 = vmatpush1.msra.mxu0 0.0
    %138 = vmatprep.subr.mxu0 0.0
    %139 = vmatpush1.msra.mxu0 0.0
    %140 = vmatprep.subr.mxu0 0.0
    %141 = vmatpush1.msra.mxu0 0.0
    %142 = vmatprep.subr.mxu0 0.0
    %143 = vmatpush1.msra.mxu0 0.0
    %144 = vmatprep.subr.mxu0 0.0
    %145 = vmatpush1.msra.mxu0 0.0
    %146 = vmatprep.subr.mxu0 0.0
    %147 = vmatpush1.msra.mxu0 0.0
    %148 = vmatprep.subr.mxu0 0.0
    %149 = vmatpush1.msra.mxu0 0.0
    %150 = vmatprep.subr.mxu0 0.0
    %151 = vmatpush1.msra.mxu0 0.0
    %152 = vmatprep.subr.mxu0 0.0
    %153 = vmatpush1.msra.mxu0 0.0
    %154 = vmatprep.mubr.f32.mxu0 0.0
    %155 = vmatmul.mubr.f32.gmra.mrb[0].mxu0 %v85
    %v156 = vpop.f32.mrb[0].mxu0
    %v157 = vadd.f32 %v81, %v156
    %v158 = vpop.f32.mrb[0].mxu0
    %159 = vmatprep.mubr.f32.mxu0 0.0
    %160 = vmatmul.mubr.f32.gmra.mrb[0].mxu0 %v88
    %v161 = vpop.f32.mrb[0].mxu0
    %v162 = vadd.f32 %v82, %v161
    %v163 = vpop.f32.mrb[0].mxu0
    %164 = vdwg.mxu0
    %v165 = vld [vmem:[%s2] sm:$0xff]
    %v166 = vld [vmem:[%s2 + $0x8] sm:$0xff]
    %v167 = vld [vmem:[%s2 + $0x10] sm:$0xff]
    %v168 = vld [vmem:[%s2 + $0x18] sm:$0xff]
    %v169 = vld [vmem:[%s2 + $0x20] sm:$0xff]
    %v170 = vld [vmem:[%s2 + $0x28] sm:$0xff]
    %v171 = vld [vmem:[%s2 + $0x30] sm:$0xff]
    %v172 = vld [vmem:[%s2 + $0x38] sm:$0xff]
    %v173 = vld [vmem:[%s3] sm:$0xff]
    %v174 = vld [vmem:[%s3 + $0x8] sm:$0xff]
    %v175 = vld [vmem:[%s3 + $0x10] sm:$0xff]
    %v176 = vld [vmem:[%s3 + $0x18] sm:$0xff]
    %v177 = vld [vmem:[%s3 + $0x20] sm:$0xff]
    %v178 = vld [vmem:[%s3 + $0x28] sm:$0xff]
    %v179 = vld [vmem:[%s3 + $0x30] sm:$0xff]
    %v180 = vld [vmem:[%s3 + $0x38] sm:$0xff]
    %v181 = vld [vmem:[%s5] sm:$0xff]
    %v182 = vld [vmem:[%s5 + $0x8] sm:$0xff]
    %v183 = vld [vmem:[%s5 + $0x10] sm:$0xff]
    %v184 = vld [vmem:[%s5 + $0x18] sm:$0xff]
    %v185 = vld [vmem:[%s6] sm:$0x1]
    %v187 = vlaneseq
    %v188 = vshrl.u32 %v187, 7
    %v189 = vsub.s32 0, %v188
    %v190 = vrot.slane %v185, %v189
    %v193 = vsel %vm83, %v157, 0
    %v196 = vsel %vm83, %v162, 0
    %198 = vmatprep.subr.mxu0 0.0
    %199 = vmatpush1.msra.mxu0 %v181
    %200 = vmatprep.subr.mxu0 0.0
    %201 = vmatpush1.msra.mxu0 %v182
    %202 = vmatprep.subr.mxu0 0.0
    %203 = vmatpush1.msra.mxu0 %v183
    %204 = vmatprep.subr.mxu0 0.0
    %205 = vmatpush1.msra.mxu0 %v184
    %206 = vmatprep.subr.mxu0 0.0
    %207 = vmatpush1.msra.mxu0 0.0
    %208 = vmatprep.subr.mxu0 0.0
    %209 = vmatpush1.msra.mxu0 0.0
    %210 = vmatprep.subr.mxu0 0.0
    %211 = vmatpush1.msra.mxu0 0.0
    %212 = vmatprep.subr.mxu0 0.0
    %213 = vmatpush1.msra.mxu0 0.0
    %214 = vmatprep.subr.mxu0 0.0
    %215 = vmatpush1.msra.mxu0 0.0
    %216 = vmatprep.subr.mxu0 0.0
    %217 = vmatpush1.msra.mxu0 0.0
    %218 = vmatprep.subr.mxu0 0.0
    %219 = vmatpush1.msra.mxu0 0.0
    %220 = vmatprep.subr.mxu0 0.0
    %221 = vmatpush1.msra.mxu0 0.0
    %222 = vmatprep.subr.mxu0 0.0
    %223 = vmatpush1.msra.mxu0 0.0
    %224 = vmatprep.subr.mxu0 0.0
    %225 = vmatpush1.msra.mxu0 0.0
    %226 = vmatprep.subr.mxu0 0.0
    %227 = vmatpush1.msra.mxu0 0.0
    %228 = vmatprep.subr.mxu0 0.0
    %229 = vmatpush1.msra.mxu0 0.0
    %230 = vmatprep.subr.mxu0 0.0
    %231 = vmatpush1.msra.mxu0 0.0
    %232 = vmatprep.subr.mxu0 0.0
    %233 = vmatpush1.msra.mxu0 0.0
    %234 = vmatprep.subr.mxu0 0.0
    %235 = vmatpush1.msra.mxu0 0.0
    %236 = vmatprep.subr.mxu0 0.0
    %237 = vmatpush1.msra.mxu0 0.0
    %238 = vmatprep.subr.mxu0 0.0
    %239 = vmatpush1.msra.mxu0 0.0
    %240 = vmatprep.subr.mxu0 0.0
    %241 = vmatpush1.msra.mxu0 0.0
    %242 = vmatprep.subr.mxu0 0.0
    %243 = vmatpush1.msra.mxu0 0.0
    %244 = vmatprep.subr.mxu0 0.0
    %245 = vmatpush1.msra.mxu0 0.0
    %246 = vmatprep.subr.mxu0 0.0
    %247 = vmatpush1.msra.mxu0 0.0
    %248 = vmatprep.subr.mxu0 0.0
    %249 = vmatpush1.msra.mxu0 0.0
    %250 = vmatprep.subr.mxu0 0.0
    %251 = vmatpush1.msra.mxu0 0.0
    %252 = vmatprep.subr.mxu0 0.0
    %253 = vmatpush1.msra.mxu0 0.0
    %254 = vmatprep.subr.mxu0 0.0
    %255 = vmatpush1.msra.mxu0 0.0
    %256 = vmatprep.subr.mxu0 0.0
    %257 = vmatpush1.msra.mxu0 0.0
    %258 = vmatprep.subr.mxu0 0.0
    %259 = vmatpush1.msra.mxu0 0.0
    %260 = vmatprep.subr.mxu0 0.0
    %261 = vmatpush1.msra.mxu0 0.0
    %262 = vmatprep.mubr.f32.mxu0 0.0
    %263 = vmatmul.mubr.f32.gmra.mrb[0].mxu0 %v193
    %v264 = vpop.f32.mrb[0].mxu0
    %v265 = vadd.f32 %v190, %v264
    %v266 = vpop.f32.mrb[0].mxu0
    %267 = vmatprep.mubr.f32.mxu0 0.0
    %268 = vmatmul.mubr.f32.gmra.mrb[0].mxu0 %v196
    %v269 = vpop.f32.mrb[0].mxu0
    %v270 = vadd.f32 %v190, %v269
    %v271 = vpop.f32.mrb[0].mxu0
    %272 = vdwg.mxu0
    %281 = vrot.lane.b32.xlu0 %v173, 32
    %v282 = vpop.permute.xlu0 %281
    %283 = vrot.lane.b32.xlu0 %v174, 32
    %v284 = vpop.permute.xlu0 %283
    %285 = vrot.lane.b32.xlu0 %v175, 32
    %v286 = vpop.permute.xlu0 %285
    %287 = vrot.lane.b32.xlu0 %v176, 32
    %v288 = vpop.permute.xlu0 %287
    %289 = vrot.lane.b32.xlu0 %v177, 32
    %v290 = vpop.permute.xlu0 %289
    %291 = vrot.lane.b32.xlu0 %v178, 32
    %v292 = vpop.permute.xlu0 %291
    %293 = vrot.lane.b32.xlu0 %v179, 32
    %v294 = vpop.permute.xlu0 %293
    %295 = vrot.lane.b32.xlu0 %v180, 32
    %v296 = vpop.permute.xlu0 %295
    %v305 = vmul.f32 %v265, %v282
    %v306 = vmul.f32 %v270, %v284
    %v307 = vmul.f32 %v265, %v286
    %v308 = vmul.f32 %v270, %v288
    %v309 = vmul.f32 %v265, %v290
    %v310 = vmul.f32 %v270, %v292
    %v311 = vmul.f32 %v265, %v294
    %v312 = vmul.f32 %v270, %v296
    %313 = vrot.lane.b32.xlu0 %v173, 64
    %v314 = vpop.permute.xlu0 %313
    %315 = vrot.lane.b32.xlu0 %v174, 64
    %v316 = vpop.permute.xlu0 %315
    %317 = vrot.lane.b32.xlu0 %v175, 64
    %v318 = vpop.permute.xlu0 %317
    %319 = vrot.lane.b32.xlu0 %v176, 64
    %v320 = vpop.permute.xlu0 %319
    %321 = vrot.lane.b32.xlu0 %v177, 64
    %v322 = vpop.permute.xlu0 %321
    %323 = vrot.lane.b32.xlu0 %v178, 64
    %v324 = vpop.permute.xlu0 %323
    %325 = vrot.lane.b32.xlu0 %v179, 64
    %v326 = vpop.permute.xlu0 %325
    %327 = vrot.lane.b32.xlu0 %v180, 64
    %v328 = vpop.permute.xlu0 %327
    %v337 = vmul.f32 %v265, %v314
    %v338 = vmul.f32 %v270, %v316
    %v339 = vmul.f32 %v265, %v318
    %v340 = vmul.f32 %v270, %v320
    %v341 = vmul.f32 %v265, %v322
    %v342 = vmul.f32 %v270, %v324
    %v343 = vmul.f32 %v265, %v326
    %v344 = vmul.f32 %v270, %v328
    %353 = vrot.lane.b32.xlu0 %v305, 96
    %v354 = vpop.permute.xlu0 %353
    %355 = vrot.lane.b32.xlu0 %v306, 96
    %v356 = vpop.permute.xlu0 %355
    %357 = vrot.lane.b32.xlu0 %v307, 96
    %v358 = vpop.permute.xlu0 %357
    %359 = vrot.lane.b32.xlu0 %v308, 96
    %v360 = vpop.permute.xlu0 %359
    %361 = vrot.lane.b32.xlu0 %v309, 96
    %v362 = vpop.permute.xlu0 %361
    %363 = vrot.lane.b32.xlu0 %v310, 96
    %v364 = vpop.permute.xlu0 %363
    %365 = vrot.lane.b32.xlu0 %v311, 96
    %v366 = vpop.permute.xlu0 %365
    %367 = vrot.lane.b32.xlu0 %v312, 96
    %v368 = vpop.permute.xlu0 %367
    %v370 = vsel %vm83, %v265, 0
    %v373 = vsel %vm83, %v270, 0
    %v375 = vsel %vm83, %v354, 0
    %v377 = vsel %vm83, %v356, 0
    %v379 = vsel %vm83, %v358, 0
    %v381 = vsel %vm83, %v360, 0
    %v383 = vsel %vm83, %v362, 0
    %v385 = vsel %vm83, %v364, 0
    %v387 = vsel %vm83, %v366, 0
    %v389 = vsel %vm83, %v368, 0
    %391 = vmatprep.subr.mxu0 0.0
    %392 = vmatpush1.xpose.msra.mxu0 %v375
    %393 = vmatprep.subr.mxu0 0.0
    %394 = vmatpush1.xpose.msra.mxu0 %v377
    %395 = vmatprep.subr.mxu0 0.0
    %396 = vmatpush1.xpose.msra.mxu0 %v379
    %397 = vmatprep.subr.mxu0 0.0
    %398 = vmatpush1.xpose.msra.mxu0 %v381
    %399 = vmatprep.subr.mxu0 0.0
    %400 = vmatpush1.xpose.msra.mxu0 %v383
    %401 = vmatprep.subr.mxu0 0.0
    %402 = vmatpush1.xpose.msra.mxu0 %v385
    %403 = vmatprep.subr.mxu0 0.0
    %404 = vmatpush1.xpose.msra.mxu0 %v387
    %405 = vmatprep.subr.mxu0 0.0
    %406 = vmatpush1.xpose.msra.mxu0 %v389
    %407 = vmatprep.subr.mxu0 0.0
    %408 = vmatpush1.xpose.msra.mxu0 0.0
    %409 = vmatprep.subr.mxu0 0.0
    %410 = vmatpush1.xpose.msra.mxu0 0.0
    %411 = vmatprep.subr.mxu0 0.0
    %412 = vmatpush1.xpose.msra.mxu0 0.0
    %413 = vmatprep.subr.mxu0 0.0
    %414 = vmatpush1.xpose.msra.mxu0 0.0
    %415 = vmatprep.subr.mxu0 0.0
    %416 = vmatpush1.xpose.msra.mxu0 0.0
    %417 = vmatprep.subr.mxu0 0.0
    %418 = vmatpush1.xpose.msra.mxu0 0.0
    %419 = vmatprep.subr.mxu0 0.0
    %420 = vmatpush1.xpose.msra.mxu0 0.0
    %421 = vmatprep.subr.mxu0 0.0
    %422 = vmatpush1.xpose.msra.mxu0 0.0
    %423 = vmatprep.subr.mxu0 0.0
    %424 = vmatpush1.xpose.msra.mxu0 0.0
    %425 = vmatprep.subr.mxu0 0.0
    %426 = vmatpush1.xpose.msra.mxu0 0.0
    %427 = vmatprep.subr.mxu0 0.0
    %428 = vmatpush1.xpose.msra.mxu0 0.0
    %429 = vmatprep.subr.mxu0 0.0
    %430 = vmatpush1.xpose.msra.mxu0 0.0
    %431 = vmatprep.subr.mxu0 0.0
    %432 = vmatpush1.xpose.msra.mxu0 0.0
    %433 = vmatprep.subr.mxu0 0.0
    %434 = vmatpush1.xpose.msra.mxu0 0.0
    %435 = vmatprep.subr.mxu0 0.0
    %436 = vmatpush1.xpose.msra.mxu0 0.0
    %437 = vmatprep.subr.mxu0 0.0
    %438 = vmatpush1.xpose.msra.mxu0 0.0
    %439 = vmatprep.subr.mxu0 0.0
    %440 = vmatpush1.xpose.msra.mxu0 0.0
    %441 = vmatprep.subr.mxu0 0.0
    %442 = vmatpush1.xpose.msra.mxu0 0.0
    %443 = vmatprep.subr.mxu0 0.0
    %444 = vmatpush1.xpose.msra.mxu0 0.0
    %445 = vmatprep.subr.mxu0 0.0
    %446 = vmatpush1.xpose.msra.mxu0 0.0
    %447 = vmatprep.subr.mxu0 0.0
    %448 = vmatpush1.xpose.msra.mxu0 0.0
    %449 = vmatprep.subr.mxu0 0.0
    %450 = vmatpush1.xpose.msra.mxu0 0.0
    %451 = vmatprep.subr.mxu0 0.0
    %452 = vmatpush1.xpose.msra.mxu0 0.0
    %453 = vmatprep.subr.mxu0 0.0
    %454 = vmatpush1.xpose.msra.mxu0 0.0
    %455 = vmatprep.mubr.f32.mxu0 0.0
    %456 = vmatmul.mubr.f32.gmra.mrb[0].mxu0 %v370
    %v457 = vpop.f32.mrb[0].mxu0
    %v458 = vadd.f32 0.0, %v457
    %v459 = vpop.f32.mrb[0].mxu0
    %460 = vmatprep.mubr.f32.mxu0 0.0
    %461 = vmatmul.mubr.f32.gmra.mrb[0].mxu0 %v373
    %v462 = vpop.f32.mrb[0].mxu0
    %v463 = vadd.f32 0.0, %v462
    %v464 = vpop.f32.mrb[0].mxu0
    %465 = vmatprep.mubr.f32.mxu0 0.0
    %466 = vmatmul.mubr.f32.gmra.mrb[0].mxu0 %v370
    %v467 = vpop.f32.mrb[0].mxu0
    %v468 = vadd.f32 0.0, %v467
    %v469 = vpop.f32.mrb[0].mxu0
    %470 = vmatprep.mubr.f32.mxu0 0.0
    %471 = vmatmul.mubr.f32.gmra.mrb[0].mxu0 %v373
    %v472 = vpop.f32.mrb[0].mxu0
    %v473 = vadd.f32 0.0, %v472
    %v474 = vpop.f32.mrb[0].mxu0
    %475 = vmatprep.mubr.f32.mxu0 0.0
    %476 = vmatmul.mubr.f32.gmra.mrb[0].mxu0 %v370
    %v477 = vpop.f32.mrb[0].mxu0
    %v478 = vadd.f32 0.0, %v477
    %v479 = vpop.f32.mrb[0].mxu0
    %480 = vmatprep.mubr.f32.mxu0 0.0
    %481 = vmatmul.mubr.f32.gmra.mrb[0].mxu0 %v373
    %v482 = vpop.f32.mrb[0].mxu0
    %v483 = vadd.f32 0.0, %v482
    %v484 = vpop.f32.mrb[0].mxu0
    %485 = vmatprep.mubr.f32.mxu0 0.0
    %486 = vmatmul.mubr.f32.gmra.mrb[0].mxu0 %v370
    %v487 = vpop.f32.mrb[0].mxu0
    %v488 = vadd.f32 0.0, %v487
    %v489 = vpop.f32.mrb[0].mxu0
    %490 = vmatprep.mubr.f32.mxu0 0.0
    %491 = vmatmul.mubr.f32.gmra.mrb[0].mxu0 %v373
    %v492 = vpop.f32.mrb[0].mxu0
    %v493 = vadd.f32 0.0, %v492
    %v494 = vpop.f32.mrb[0].mxu0
    %495 = vdwg.mxu0
    %v496 = vmul.f32 %v458, 0.35355338
    %v497 = vmul.f32 %v463, 0.35355338
    %v498 = vmul.f32 %v468, 0.35355338
    %v499 = vmul.f32 %v473, 0.35355338
    %v500 = vmul.f32 %v478, 0.35355338
    %v501 = vmul.f32 %v483, 0.35355338
    %v502 = vmul.f32 %v488, 0.35355338
    %v503 = vmul.f32 %v493, 0.35355338
    %v504 = vadd.f32 %v496, %v165
    %v505 = vadd.f32 %v497, %v166
    %v506 = vadd.f32 %v498, %v167
    %v507 = vadd.f32 %v499, %v168
    %v508 = vadd.f32 %v500, %v169
    %v509 = vadd.f32 %v501, %v170
    %v510 = vadd.f32 %v502, %v171
    %v511 = vadd.f32 %v503, %v172
    %vm512 = vcmask 523264
    %v513 = vsel %vm512, %v504, -inf
    %514 = vmax.xlane.f32.xlu0 %v513
    %v515 = vpop.xlane.xlu0 %514
    %v516 = vsel %vm512, %v505, -inf
    %517 = vmax.xlane.f32.xlu0 %v516
    %v518 = vpop.xlane.xlu0 %517
    %v519 = vsel %vm512, %v506, -inf
    %520 = vmax.xlane.f32.xlu0 %v519
    %v521 = vpop.xlane.xlu0 %520
    %v522 = vsel %vm512, %v507, -inf
    %523 = vmax.xlane.f32.xlu0 %v522
    %v524 = vpop.xlane.xlu0 %523
    %v525 = vsel %vm512, %v508, -inf
    %526 = vmax.xlane.f32.xlu0 %v525
    %v527 = vpop.xlane.xlu0 %526
    %v528 = vsel %vm512, %v509, -inf
    %529 = vmax.xlane.f32.xlu0 %v528
    %v530 = vpop.xlane.xlu0 %529
    %v531 = vsel %vm512, %v510, -inf
    %532 = vmax.xlane.f32.xlu0 %v531
    %v533 = vpop.xlane.xlu0 %532
    %v534 = vsel %vm512, %v511, -inf
    %535 = vmax.xlane.f32.xlu0 %v534
    %v536 = vpop.xlane.xlu0 %535
    %v537 = vsub.f32 %v504, %v515
    %v538 = vsub.f32 %v505, %v518
    %v539 = vsub.f32 %v506, %v521
    %v540 = vsub.f32 %v507, %v524
    %v541 = vsub.f32 %v508, %v527
    %v542 = vsub.f32 %v509, %v530
    %v543 = vsub.f32 %v510, %v533
    %v544 = vsub.f32 %v511, %v536
    %v545 = vmul.f32 %v537, 1.442695
    %v546 = vpow.pop %v545
    %v547 = vmul.f32 %v538, 1.442695
    %v548 = vpow.pop %v547
    %v549 = vmul.f32 %v539, 1.442695
    %v550 = vpow.pop %v549
    %v551 = vmul.f32 %v540, 1.442695
    %v552 = vpow.pop %v551
    %v553 = vmul.f32 %v541, 1.442695
    %v554 = vpow.pop %v553
    %v555 = vmul.f32 %v542, 1.442695
    %v556 = vpow.pop %v555
    %v557 = vmul.f32 %v543, 1.442695
    %v558 = vpow.pop %v557
    %v559 = vmul.f32 %v544, 1.442695
    %v560 = vpow.pop %v559
    %v561 = vsel %vm512, %v546, 0.0
    %562 = vadd.xlane.f32.xlu0 %v561
    %v563 = vpop.xlane.xlu0 %562
    %v564 = vsel %vm512, %v548, 0.0
    %565 = vadd.xlane.f32.xlu0 %v564
    %v566 = vpop.xlane.xlu0 %565
    %v567 = vsel %vm512, %v550, 0.0
    %568 = vadd.xlane.f32.xlu0 %v567
    %v569 = vpop.xlane.xlu0 %568
    %v570 = vsel %vm512, %v552, 0.0
    %571 = vadd.xlane.f32.xlu0 %v570
    %v572 = vpop.xlane.xlu0 %571
    %v573 = vsel %vm512, %v554, 0.0
    %574 = vadd.xlane.f32.xlu0 %v573
    %v575 = vpop.xlane.xlu0 %574
    %v576 = vsel %vm512, %v556, 0.0
    %577 = vadd.xlane.f32.xlu0 %v576
    %v578 = vpop.xlane.xlu0 %577
    %v579 = vsel %vm512, %v558, 0.0
    %580 = vadd.xlane.f32.xlu0 %v579
    %v581 = vpop.xlane.xlu0 %580
    %v582 = vsel %vm512, %v560, 0.0
    %583 = vadd.xlane.f32.xlu0 %v582
    %v584 = vpop.xlane.xlu0 %583
    %v585 = vrcp.pop %v563
    %v586 = vrcp.pop %v566
    %v587 = vrcp.pop %v569
    %v588 = vrcp.pop %v572
    %v589 = vrcp.pop %v575
    %v590 = vrcp.pop %v578
    %v591 = vrcp.pop %v581
    %v592 = vrcp.pop %v584
    %v593 = vmul.f32 %v546, %v585
    %v594 = vmul.f32 %v548, %v586
    %v595 = vmul.f32 %v550, %v587
    %v596 = vmul.f32 %v552, %v588
    %v597 = vmul.f32 %v554, %v589
    %v598 = vmul.f32 %v556, %v590
    %v599 = vmul.f32 %v558, %v591
    %v600 = vmul.f32 %v560, %v592
    %609 = vrot.lane.b32.xlu0 %v337, 64
    %v610 = vpop.permute.xlu0 %609
    %611 = vrot.lane.b32.xlu0 %v338, 64
    %v612 = vpop.permute.xlu0 %611
    %613 = vrot.lane.b32.xlu0 %v339, 64
    %v614 = vpop.permute.xlu0 %613
    %615 = vrot.lane.b32.xlu0 %v340, 64
    %v616 = vpop.permute.xlu0 %615
    %617 = vrot.lane.b32.xlu0 %v341, 64
    %v618 = vpop.permute.xlu0 %617
    %619 = vrot.lane.b32.xlu0 %v342, 64
    %v620 = vpop.permute.xlu0 %619
    %621 = vrot.lane.b32.xlu0 %v343, 64
    %v622 = vpop.permute.xlu0 %621
    %623 = vrot.lane.b32.xlu0 %v344, 64
    %v624 = vpop.permute.xlu0 %623
    %v634 = vsel %vm512, %v593, 0
    %v637 = vsel %vm512, %v594, 0
    %v640 = vsel %vm512, %v595, 0
    %v643 = vsel %vm512, %v596, 0
    %v646 = vsel %vm512, %v597, 0
    %v649 = vsel %vm512, %v598, 0
    %v652 = vsel %vm512, %v599, 0
    %v655 = vsel %vm512, %v600, 0
    %657 = vmatprep.subr.mxu0 0.0
    %658 = vmatpush1.msra.mxu0 %v610
    %659 = vmatprep.subr.mxu0 0.0
    %660 = vmatpush1.msra.mxu0 %v612
    %661 = vmatprep.subr.mxu0 0.0
    %662 = vmatpush1.msra.mxu0 %v614
    %663 = vmatprep.subr.mxu0 0.0
    %664 = vmatpush1.msra.mxu0 %v616
    %665 = vmatprep.subr.mxu0 0.0
    %666 = vmatpush1.msra.mxu0 %v618
    %667 = vmatprep.subr.mxu0 0.0
    %668 = vmatpush1.msra.mxu0 %v620
    %669 = vmatprep.subr.mxu0 0.0
    %670 = vmatpush1.msra.mxu0 %v622
    %671 = vmatprep.subr.mxu0 0.0
    %672 = vmatpush1.msra.mxu0 %v624
    %673 = vmatprep.subr.mxu0 0.0
    %674 = vmatpush1.msra.mxu0 0.0
    %675 = vmatprep.subr.mxu0 0.0
    %676 = vmatpush1.msra.mxu0 0.0
    %677 = vmatprep.subr.mxu0 0.0
    %678 = vmatpush1.msra.mxu0 0.0
    %679 = vmatprep.subr.mxu0 0.0
    %680 = vmatpush1.msra.mxu0 0.0
    %681 = vmatprep.subr.mxu0 0.0
    %682 = vmatpush1.msra.mxu0 0.0
    %683 = vmatprep.subr.mxu0 0.0
    %684 = vmatpush1.msra.mxu0 0.0
    %685 = vmatprep.subr.mxu0 0.0
    %686 = vmatpush1.msra.mxu0 0.0
    %687 = vmatprep.subr.mxu0 0.0
    %688 = vmatpush1.msra.mxu0 0.0
    %689 = vmatprep.subr.mxu0 0.0
    %690 = vmatpush1.msra.mxu0 0.0
    %691 = vmatprep.subr.mxu0 0.0
    %692 = vmatpush1.msra.mxu0 0.0
    %693 = vmatprep.subr.mxu0 0.0
    %694 = vmatpush1.msra.mxu0 0.0
    %695 = vmatprep.subr.mxu0 0.0
    %696 = vmatpush1.msra.mxu0 0.0
    %697 = vmatprep.subr.mxu0 0.0
    %698 = vmatpush1.msra.mxu0 0.0
    %699 = vmatprep.subr.mxu0 0.0
    %700 = vmatpush1.msra.mxu0 0.0
    %701 = vmatprep.subr.mxu0 0.0
    %702 = vmatpush1.msra.mxu0 0.0
    %703 = vmatprep.subr.mxu0 0.0
    %704 = vmatpush1.msra.mxu0 0.0
    %705 = vmatprep.subr.mxu0 0.0
    %706 = vmatpush1.msra.mxu0 0.0
    %707 = vmatprep.subr.mxu0 0.0
    %708 = vmatpush1.msra.mxu0 0.0
    %709 = vmatprep.subr.mxu0 0.0
    %710 = vmatpush1.msra.mxu0 0.0
    %711 = vmatprep.subr.mxu0 0.0
    %712 = vmatpush1.msra.mxu0 0.0
    %713 = vmatprep.subr.mxu0 0.0
    %714 = vmatpush1.msra.mxu0 0.0
    %715 = vmatprep.subr.mxu0 0.0
    %716 = vmatpush1.msra.mxu0 0.0
    %717 = vmatprep.subr.mxu0 0.0
    %718 = vmatpush1.msra.mxu0 0.0
    %719 = vmatprep.subr.mxu0 0.0
    %720 = vmatpush1.msra.mxu0 0.0
    %721 = vmatprep.mubr.f32.mxu0 0.0
    %722 = vmatmul.mubr.f32.gmra.mrb[0].mxu0 %v634
    %v723 = vpop.f32.mrb[0].mxu0
    %v724 = vadd.f32 0.0, %v723
    %v725 = vpop.f32.mrb[0].mxu0
    %726 = vmatprep.mubr.f32.mxu0 0.0
    %727 = vmatmul.mubr.f32.gmra.mrb[0].mxu0 %v637
    %v728 = vpop.f32.mrb[0].mxu0
    %v729 = vadd.f32 0.0, %v728
    %v730 = vpop.f32.mrb[0].mxu0
    %731 = vmatprep.mubr.f32.mxu0 0.0
    %732 = vmatmul.mubr.f32.gmra.mrb[0].mxu0 %v640
    %v733 = vpop.f32.mrb[0].mxu0
    %v734 = vadd.f32 0.0, %v733
    %v735 = vpop.f32.mrb[0].mxu0
    %736 = vmatprep.mubr.f32.mxu0 0.0
    %737 = vmatmul.mubr.f32.gmra.mrb[0].mxu0 %v643
    %v738 = vpop.f32.mrb[0].mxu0
    %v739 = vadd.f32 0.0, %v738
    %v740 = vpop.f32.mrb[0].mxu0
    %741 = vmatprep.mubr.f32.mxu0 0.0
    %742 = vmatmul.mubr.f32.gmra.mrb[0].mxu0 %v646
    %v743 = vpop.f32.mrb[0].mxu0
    %v744 = vadd.f32 0.0, %v743
    %v745 = vpop.f32.mrb[0].mxu0
    %746 = vmatprep.mubr.f32.mxu0 0.0
    %747 = vmatmul.mubr.f32.gmra.mrb[0].mxu0 %v649
    %v748 = vpop.f32.mrb[0].mxu0
    %v749 = vadd.f32 0.0, %v748
    %v750 = vpop.f32.mrb[0].mxu0
    %751 = vmatprep.mubr.f32.mxu0 0.0
    %752 = vmatmul.mubr.f32.gmra.mrb[0].mxu0 %v652
    %v753 = vpop.f32.mrb[0].mxu0
    %v754 = vadd.f32 0.0, %v753
    %v755 = vpop.f32.mrb[0].mxu0
    %756 = vmatprep.mubr.f32.mxu0 0.0
    %757 = vmatmul.mubr.f32.gmra.mrb[0].mxu0 %v655
    %v758 = vpop.f32.mrb[0].mxu0
    %v759 = vadd.f32 0.0, %v758
    %v760 = vpop.f32.mrb[0].mxu0
    %761 = vdwg.mxu0
    %v762 = vadd.f32 %v724, %v734
    %v763 = vadd.f32 %v729, %v739
    %v764 = vadd.f32 %v762, %v744
    %v765 = vadd.f32 %v763, %v749
    %v766 = vadd.f32 %v764, %v754
    %v767 = vadd.f32 %v765, %v759
    %v768 = vld [vmem:[%s7] sm:$0xff]
    %v769 = vld [vmem:[%s7 + $0x8] sm:$0xff]
    %v770 = vld [vmem:[%s7 + $0x10] sm:$0xff]
    %v771 = vld [vmem:[%s7 + $0x18] sm:$0xff]
    %v772 = vld [vmem:[%s8] sm:$0x1]
    %v774 = vlaneseq
    %v775 = vshrl.u32 %v774, 7
    %v776 = vsub.s32 0, %v775
    %v777 = vrot.slane %v772, %v776
    %v780 = vsel %vm83, %v766, 0
    %v783 = vsel %vm83, %v767, 0
    %785 = vmatprep.subr.mxu0 0.0
    %786 = vmatpush1.msra.mxu0 %v768
    %787 = vmatprep.subr.mxu0 0.0
    %788 = vmatpush1.msra.mxu0 %v769
    %789 = vmatprep.subr.mxu0 0.0
    %790 = vmatpush1.msra.mxu0 %v770
    %791 = vmatprep.subr.mxu0 0.0
    %792 = vmatpush1.msra.mxu0 %v771
    %793 = vmatprep.subr.mxu0 0.0
    %794 = vmatpush1.msra.mxu0 0.0
    %795 = vmatprep.subr.mxu0 0.0
    %796 = vmatpush1.msra.mxu0 0.0
    %797 = vmatprep.subr.mxu0 0.0
    %798 = vmatpush1.msra.mxu0 0.0
    %799 = vmatprep.subr.mxu0 0.0
    %800 = vmatpush1.msra.mxu0 0.0
    %801 = vmatprep.subr.mxu0 0.0
    %802 = vmatpush1.msra.mxu0 0.0
    %803 = vmatprep.subr.mxu0 0.0
    %804 = vmatpush1.msra.mxu0 0.0
    %805 = vmatprep.subr.mxu0 0.0
    %806 = vmatpush1.msra.mxu0 0.0
    %807 = vmatprep.subr.mxu0 0.0
    %808 = vmatpush1.msra.mxu0 0.0
    %809 = vmatprep.subr.mxu0 0.0
    %810 = vmatpush1.msra.mxu0 0.0
    %811 = vmatprep.subr.mxu0 0.0
    %812 = vmatpush1.msra.mxu0 0.0
    %813 = vmatprep.subr.mxu0 0.0
    %814 = vmatpush1.msra.mxu0 0.0
    %815 = vmatprep.subr.mxu0 0.0
    %816 = vmatpush1.msra.mxu0 0.0
    %817 = vmatprep.subr.mxu0 0.0
    %818 = vmatpush1.msra.mxu0 0.0
    %819 = vmatprep.subr.mxu0 0.0
    %820 = vmatpush1.msra.mxu0 0.0
    %821 = vmatprep.subr.mxu0 0.0
    %822 = vmatpush1.msra.mxu0 0.0
    %823 = vmatprep.subr.mxu0 0.0
    %824 = vmatpush1.msra.mxu0 0.0
    %825 = vmatprep.subr.mxu0 0.0
    %826 = vmatpush1.msra.mxu0 0.0
    %827 = vmatprep.subr.mxu0 0.0
    %828 = vmatpush1.msra.mxu0 0.0
    %829 = vmatprep.subr.mxu0 0.0
    %830 = vmatpush1.msra.mxu0 0.0
    %831 = vmatprep.subr.mxu0 0.0
    %832 = vmatpush1.msra.mxu0 0.0
    %833 = vmatprep.subr.mxu0 0.0
    %834 = vmatpush1.msra.mxu0 0.0
    %835 = vmatprep.subr.mxu0 0.0
    %836 = vmatpush1.msra.mxu0 0.0
    %837 = vmatprep.subr.mxu0 0.0
    %838 = vmatpush1.msra.mxu0 0.0
    %839 = vmatprep.subr.mxu0 0.0
    %840 = vmatpush1.msra.mxu0 0.0
    %841 = vmatprep.subr.mxu0 0.0
    %842 = vmatpush1.msra.mxu0 0.0
    %843 = vmatprep.subr.mxu0 0.0
    %844 = vmatpush1.msra.mxu0 0.0
    %845 = vmatprep.subr.mxu0 0.0
    %846 = vmatpush1.msra.mxu0 0.0
    %847 = vmatprep.subr.mxu0 0.0
    %848 = vmatpush1.msra.mxu0 0.0
    %849 = vmatprep.mubr.f32.mxu0 0.0
    %850 = vmatmul.mubr.f32.gmra.mrb[0].mxu0 %v780
    %v851 = vpop.f32.mrb[0].mxu0
    %v852 = vadd.f32 %v777, %v851
    %v853 = vpop.f32.mrb[0].mxu0
    %854 = vmatprep.mubr.f32.mxu0 0.0
    %855 = vmatmul.mubr.f32.gmra.mrb[0].mxu0 %v783
    %v856 = vpop.f32.mrb[0].mxu0
    %v857 = vadd.f32 %v777, %v856
    %v858 = vpop.f32.mrb[0].mxu0
    %859 = vdwg.mxu0
    %v860 = vadd.f32 %v157, %v852
    %v861 = vadd.f32 %v162, %v857
    %v862 = vld [vmem:[%s9] sm:$0x1]
    %v863 = vld [vmem:[%s10] sm:$0x1]
    %v864 = vsel %vm83, %v860, 0.0
    %865 = vadd.xlane.f32.xlu0 %v864
    %v866 = vpop.xlane.xlu0 %865
    %v867 = vsel %vm83, %v861, 0.0
    %868 = vadd.xlane.f32.xlu0 %v867
    %v869 = vpop.xlane.xlu0 %868
    %v870 = vrcp.pop 32.0
    %v871 = vmul.f32 %v866, %v870
    %v872 = vmul.f32 %v869, %v870
    %v873 = vsub.f32 %v860, %v871
    %v874 = vsub.f32 %v861, %v872
    %v875 = vmul.f32 %v873, %v873
    %v876 = vmul.f32 %v874, %v874
    %v877 = vsel %vm83, %v875, 0.0
    %878 = vadd.xlane.f32.xlu0 %v877
    %v879 = vpop.xlane.xlu0 %878
    %v880 = vsel %vm83, %v876, 0.0
    %881 = vadd.xlane.f32.xlu0 %v880
    %v882 = vpop.xlane.xlu0 %881
    %v883 = vmul.f32 %v879, %v870
    %v884 = vmul.f32 %v882, %v870
    %v885 = vadd.f32 %v883, 1e-05
    %v886 = vadd.f32 %v884, 1e-05
    %v887 = vrsqrt.pop %v885
    %v888 = vrsqrt.pop %v886
    %v889 = vmul.f32 %v873, %v887
    %v890 = vmul.f32 %v874, %v888
    %v892 = vlaneseq
    %v893 = vshrl.u32 %v892, 7
    %v894 = vsub.s32 0, %v893
    %v895 = vrot.slane %v862, %v894
    %v897 = vmul.f32 %v889, %v895
    %v898 = vmul.f32 %v890, %v895
    %v900 = vlaneseq
    %v901 = vshrl.u32 %v900, 7
    %v902 = vsub.s32 0, %v901
    %v903 = vrot.slane %v863, %v902
    %v905 = vadd.f32 %v897, %v903
    %v906 = vadd.f32 %v898, %v903
    %v907 = vld [vmem:[%s11] sm:$0xff]
    %v908 = vld [vmem:[%s11 + $0x8] sm:$0xff]
    %v909 = vld [vmem:[%s11 + $0x10] sm:$0xff]
    %v910 = vld [vmem:[%s11 + $0x18] sm:$0xff]
    %v911 = vld [vmem:[%s12] sm:$0x1]
    %v913 = vlaneseq
    %v914 = vshrl.u32 %v913, 7
    %v915 = vsub.s32 0, %v914
    %v916 = vrot.slane %v911, %v915
    %v919 = vsel %vm83, %v905, 0
    %v922 = vsel %vm83, %v906, 0
    %924 = vmatprep.subr.mxu0 0.0
    %925 = vmatpush1.msra.mxu0 %v907
    %926 = vmatprep.subr.mxu0 0.0
    %927 = vmatpush1.msra.mxu0 %v908
    %928 = vmatprep.subr.mxu0 0.0
    %929 = vmatpush1.msra.mxu0 %v909
    %930 = vmatprep.subr.mxu0 0.0
    %931 = vmatpush1.msra.mxu0 %v910
    %932 = vmatprep.subr.mxu0 0.0
    %933 = vmatpush1.msra.mxu0 0.0
    %934 = vmatprep.subr.mxu0 0.0
    %935 = vmatpush1.msra.mxu0 0.0
    %936 = vmatprep.subr.mxu0 0.0
    %937 = vmatpush1.msra.mxu0 0.0
    %938 = vmatprep.subr.mxu0 0.0
    %939 = vmatpush1.msra.mxu0 0.0
    %940 = vmatprep.subr.mxu0 0.0
    %941 = vmatpush1.msra.mxu0 0.0
    %942 = vmatprep.subr.mxu0 0.0
    %943 = vmatpush1.msra.mxu0 0.0
    %944 = vmatprep.subr.mxu0 0.0
    %945 = vmatpush1.msra.mxu0 0.0
    %946 = vmatprep.subr.mxu0 0.0
    %947 = vmatpush1.msra.mxu0 0.0
    %948 = vmatprep.subr.mxu0 0.0
    %949 = vmatpush1.msra.mxu0 0.0
    %950 = vmatprep.subr.mxu0 0.0
    %951 = vmatpush1.msra.mxu0 0.0
    %952 = vmatprep.subr.mxu0 0.0
    %953 = vmatpush1.msra.mxu0 0.0
    %954 = vmatprep.subr.mxu0 0.0
    %955 = vmatpush1.msra.mxu0 0.0
    %956 = vmatprep.subr.mxu0 0.0
    %957 = vmatpush1.msra.mxu0 0.0
    %958 = vmatprep.subr.mxu0 0.0
    %959 = vmatpush1.msra.mxu0 0.0
    %960 = vmatprep.subr.mxu0 0.0
    %961 = vmatpush1.msra.mxu0 0.0
    %962 = vmatprep.subr.mxu0 0.0
    %963 = vmatpush1.msra.mxu0 0.0
    %964 = vmatprep.subr.mxu0 0.0
    %965 = vmatpush1.msra.mxu0 0.0
    %966 = vmatprep.subr.mxu0 0.0
    %967 = vmatpush1.msra.mxu0 0.0
    %968 = vmatprep.subr.mxu0 0.0
    %969 = vmatpush1.msra.mxu0 0.0
    %970 = vmatprep.subr.mxu0 0.0
    %971 = vmatpush1.msra.mxu0 0.0
    %972 = vmatprep.subr.mxu0 0.0
    %973 = vmatpush1.msra.mxu0 0.0
    %974 = vmatprep.subr.mxu0 0.0
    %975 = vmatpush1.msra.mxu0 0.0
    %976 = vmatprep.subr.mxu0 0.0
    %977 = vmatpush1.msra.mxu0 0.0
    %978 = vmatprep.subr.mxu0 0.0
    %979 = vmatpush1.msra.mxu0 0.0
    %980 = vmatprep.subr.mxu0 0.0
    %981 = vmatpush1.msra.mxu0 0.0
    %982 = vmatprep.subr.mxu0 0.0
    %983 = vmatpush1.msra.mxu0 0.0
    %984 = vmatprep.subr.mxu0 0.0
    %985 = vmatpush1.msra.mxu0 0.0
    %986 = vmatprep.subr.mxu0 0.0
    %987 = vmatpush1.msra.mxu0 0.0
    %988 = vmatprep.mubr.f32.mxu0 0.0
    %989 = vmatmul.mubr.f32.gmra.mrb[0].mxu0 %v919
    %v990 = vpop.f32.mrb[0].mxu0
    %v991 = vadd.f32 %v916, %v990
    %v992 = vpop.f32.mrb[0].mxu0
    %993 = vmatprep.mubr.f32.mxu0 0.0
    %994 = vmatmul.mubr.f32.gmra.mrb[0].mxu0 %v922
    %v995 = vpop.f32.mrb[0].mxu0
    %v996 = vadd.f32 %v916, %v995
    %v997 = vpop.f32.mrb[0].mxu0
    %998 = vdwg.mxu0
    %v999 = vmul.f32 %v991, 0.5
    %v1000 = vmul.f32 %v996, 0.5
    %v1001 = vmul.f32 %v991, 0.044715
    %v1002 = vmul.f32 %v996, 0.044715
    %v1003 = vmul.f32 %v1001, %v991
    %v1004 = vmul.f32 %v1002, %v996
    %v1005 = vmul.f32 %v1003, %v991
    %v1006 = vmul.f32 %v1004, %v996
    %v1007 = vadd.f32 %v991, %v1005
    %v1008 = vadd.f32 %v996, %v1006
    %v1009 = vmul.f32 %v1007, 0.7978846
    %v1010 = vmul.f32 %v1008, 0.7978846
    %v1011 = vtanh.pop %v1009
    %v1012 = vtanh.pop %v1010
    %v1013 = vadd.f32 %v1011, 1.0
    %v1014 = vadd.f32 %v1012, 1.0
    %v1015 = vmul.f32 %v999, %v1013
    %v1016 = vmul.f32 %v1000, %v1014
    %v1017 = vld [vmem:[%s13] sm:$0xff]
    %v1018 = vld [vmem:[%s13 + $0x8] sm:$0xff]
    %v1019 = vld [vmem:[%s13 + $0x10] sm:$0xff]
    %v1020 = vld [vmem:[%s13 + $0x18] sm:$0xff]
    %v1021 = vld [vmem:[%s13 + $0x20] sm:$0xff]
    %v1022 = vld [vmem:[%s13 + $0x28] sm:$0xff]
    %v1023 = vld [vmem:[%s13 + $0x30] sm:$0xff]
    %v1024 = vld [vmem:[%s13 + $0x38] sm:$0xff]
    %v1025 = vld [vmem:[%s13 + $0x40] sm:$0xff]
    %v1026 = vld [vmem:[%s13 + $0x48] sm:$0xff]
    %v1027 = vld [vmem:[%s13 + $0x50] sm:$0xff]
    %v1028 = vld [vmem:[%s13 + $0x58] sm:$0xff]
    %v1029 = vld [vmem:[%s13 + $0x60] sm:$0xff]
    %v1030 = vld [vmem:[%s13 + $0x68] sm:$0xff]
    %v1031 = vld [vmem:[%s13 + $0x70] sm:$0xff]
    %v1032 = vld [vmem:[%s13 + $0x78] sm:$0xff]
    %v1033 = vld [vmem:[%s14] sm:$0x1]
    %v1035 = vlaneseq
    %v1036 = vshrl.u32 %v1035, 7
    %v1037 = vsub.s32 0, %v1036
    %v1038 = vrot.slane %v1033, %v1037
    %1040 = vmatprep.subr.mxu0 0.0
    %1041 = vmatpush1.msra.mxu0 %v1017
    %1042 = vmatprep.subr.mxu0 0.0
    %1043 = vmatpush1.msra.mxu0 %v1018
    %1044 = vmatprep.subr.mxu0 0.0
    %1045 = vmatpush1.msra.mxu0 %v1019
    %1046 = vmatprep.subr.mxu0 0.0
    %1047 = vmatpush1.msra.mxu0 %v1020
    %1048 = vmatprep.subr.mxu0 0.0
    %1049 = vmatpush1.msra.mxu0 %v1021
    %1050 = vmatprep.subr.mxu0 0.0
    %1051 = vmatpush1.msra.mxu0 %v1022
    %1052 = vmatprep.subr.mxu0 0.0
    %1053 = vmatpush1.msra.mxu0 %v1023
    %1054 = vmatprep.subr.mxu0 0.0
    %1055 = vmatpush1.msra.mxu0 %v1024
    %1056 = vmatprep.subr.mxu0 0.0
    %1057 = vmatpush1.msra.mxu0 %v1025
    %1058 = vmatprep.subr.mxu0 0.0
    %1059 = vmatpush1.msra.mxu0 %v1026
    %1060 = vmatprep.subr.mxu0 0.0
    %1061 = vmatpush1.msra.mxu0 %v1027
    %1062 = vmatprep.subr.mxu0 0.0
    %1063 = vmatpush1.msra.mxu0 %v1028
    %1064 = vmatprep.subr.mxu0 0.0
    %1065 = vmatpush1.msra.mxu0 %v1029
    %1066 = vmatprep.subr.mxu0 0.0
    %1067 = vmatpush1.msra.mxu0 %v1030
    %1068 = vmatprep.subr.mxu0 0.0
    %1069 = vmatpush1.msra.mxu0 %v1031
    %1070 = vmatprep.subr.mxu0 0.0
    %1071 = vmatpush1.msra.mxu0 %v1032
    %1072 = vmatprep.subr.mxu0 0.0
    %1073 = vmatpush1.msra.mxu0 0.0
    %1074 = vmatprep.subr.mxu0 0.0
    %1075 = vmatpush1.msra.mxu0 0.0
    %1076 = vmatprep.subr.mxu0 0.0
    %1077 = vmatpush1.msra.mxu0 0.0
    %1078 = vmatprep.subr.mxu0 0.0
    %1079 = vmatpush1.msra.mxu0 0.0
    %1080 = vmatprep.subr.mxu0 0.0
    %1081 = vmatpush1.msra.mxu0 0.0
    %1082 = vmatprep.subr.mxu0 0.0
    %1083 = vmatpush1.msra.mxu0 0.0
    %1084 = vmatprep.subr.mxu0 0.0
    %1085 = vmatpush1.msra.mxu0 0.0
    %1086 = vmatprep.subr.mxu0 0.0
    %1087 = vmatpush1.msra.mxu0 0.0
    %1088 = vmatprep.subr.mxu0 0.0
    %1089 = vmatpush1.msra.mxu0 0.0
    %1090 = vmatprep.subr.mxu0 0.0
    %1091 = vmatpush1.msra.mxu0 0.0
    %1092 = vmatprep.subr.mxu0 0.0
    %1093 = vmatpush1.msra.mxu0 0.0
    %1094 = vmatprep.subr.mxu0 0.0
    %1095 = vmatpush1.msra.mxu0 0.0
    %1096 = vmatprep.subr.mxu0 0.0
    %1097 = vmatpush1.msra.mxu0 0.0
    %1098 = vmatprep.subr.mxu0 0.0
    %1099 = vmatpush1.msra.mxu0 0.0
    %1100 = vmatprep.subr.mxu0 0.0
    %1101 = vmatpush1.msra.mxu0 0.0
    %1102 = vmatprep.subr.mxu0 0.0
    %1103 = vmatpush1.msra.mxu0 0.0
    %1104 = vmatprep.mubr.f32.mxu0 0.0
    %1105 = vmatmul.mubr.f32.gmra.mrb[0].mxu0 %v1015
    %v1106 = vpop.f32.mrb[0].mxu0
    %v1107 = vadd.f32 %v1038, %v1106
    %v1108 = vpop.f32.mrb[0].mxu0
    %1109 = vmatprep.mubr.f32.mxu0 0.0
    %1110 = vmatmul.mubr.f32.gmra.mrb[0].mxu0 %v1016
    %v1111 = vpop.f32.mrb[0].mxu0
    %v1112 = vadd.f32 %v1038, %v1111
    %v1113 = vpop.f32.mrb[0].mxu0
    %1114 = vdwg.mxu0
    %v1115 = vadd.f32 %v905, %v1107
    %v1116 = vadd.f32 %v906, %v1112
    %v1117 = vld [vmem:[%s15] sm:$0x1]
    %v1118 = vld [vmem:[%s16] sm:$0x1]
    %v1119 = vsel %vm83, %v1115, 0.0
    %1120 = vadd.xlane.f32.xlu0 %v1119
    %v1121 = vpop.xlane.xlu0 %1120
    %v1122 = vsel %vm83, %v1116, 0.0
    %1123 = vadd.xlane.f32.xlu0 %v1122
    %v1124 = vpop.xlane.xlu0 %1123
    %v1125 = vmul.f32 %v1121, %v870
    %v1126 = vmul.f32 %v1124, %v870
    %v1127 = vsub.f32 %v1115, %v1125
    %v1128 = vsub.f32 %v1116, %v1126
    %v1129 = vmul.f32 %v1127, %v1127
    %v1130 = vmul.f32 %v1128, %v1128
    %v1131 = vsel %vm83, %v1129, 0.0
    %1132 = vadd.xlane.f32.xlu0 %v1131
    %v1133 = vpop.xlane.xlu0 %1132
    %v1134 = vsel %vm83, %v1130, 0.0
    %1135 = vadd.xlane.f32.xlu0 %v1134
    %v1136 = vpop.xlane.xlu0 %1135
    %v1137 = vmul.f32 %v1133, %v870
    %v1138 = vmul.f32 %v1136, %v870
    %v1139 = vadd.f32 %v1137, 1e-05
    %v1140 = vadd.f32 %v1138, 1e-05
    %v1141 = vrsqrt.pop %v1139
    %v1142 = vrsqrt.pop %v1140
    %v1143 = vmul.f32 %v1127, %v1141
    %v1144 = vmul.f32 %v1128, %v1142
    %v1146 = vlaneseq
    %v1147 = vshrl.u32 %v1146, 7
    %v1148 = vsub.s32 0, %v1147
    %v1149 = vrot.slane %v1117, %v1148
    %v1151 = vmul.f32 %v1143, %v1149
    %v1152 = vmul.f32 %v1144, %v1149
    %v1154 = vlaneseq
    %v1155 = vshrl.u32 %v1154, 7
    %v1156 = vsub.s32 0, %v1155
    %v1157 = vrot.slane %v1118, %v1156
    %v1159 = vadd.f32 %v1151, %v1157
    %v1160 = vadd.f32 %v1152, %v1157
    %s1161 = scalar_lea.vmem %s5, 32
    %v1162 = vld [vmem:[%s1161] sm:$0xff]
    %v1163 = vld [vmem:[%s1161 + $0x8] sm:$0xff]
    %v1164 = vld [vmem:[%s1161 + $0x10] sm:$0xff]
    %v1165 = vld [vmem:[%s1161 + $0x18] sm:$0xff]
    %s1166 = scalar_lea.vmem %s6, 1
    %v1167 = vld [vmem:[%s1166] sm:$0x1]
    %v1169 = vlaneseq
    %v1170 = vshrl.u32 %v1169, 7
    %v1171 = vsub.s32 0, %v1170
    %v1172 = vrot.slane %v1167, %v1171
    %v1175 = vsel %vm83, %v1159, 0
    %v1178 = vsel %vm83, %v1160, 0
    %1180 = vmatprep.subr.mxu0 0.0
    %1181 = vmatpush1.msra.mxu0 %v1162
    %1182 = vmatprep.subr.mxu0 0.0
    %1183 = vmatpush1.msra.mxu0 %v1163
    %1184 = vmatprep.subr.mxu0 0.0
    %1185 = vmatpush1.msra.mxu0 %v1164
    %1186 = vmatprep.subr.mxu0 0.0
    %1187 = vmatpush1.msra.mxu0 %v1165
    %1188 = vmatprep.subr.mxu0 0.0
    %1189 = vmatpush1.msra.mxu0 0.0
    %1190 = vmatprep.subr.mxu0 0.0
    %1191 = vmatpush1.msra.mxu0 0.0
    %1192 = vmatprep.subr.mxu0 0.0
    %1193 = vmatpush1.msra.mxu0 0.0
    %1194 = vmatprep.subr.mxu0 0.0
    %1195 = vmatpush1.msra.mxu0 0.0
    %1196 = vmatprep.subr.mxu0 0.0
    %1197 = vmatpush1.msra.mxu0 0.0
    %1198 = vmatprep.subr.mxu0 0.0
    %1199 = vmatpush1.msra.mxu0 0.0
    %1200 = vmatprep.subr.mxu0 0.0
    %1201 = vmatpush1.msra.mxu0 0.0
    %1202 = vmatprep.subr.mxu0 0.0
    %1203 = vmatpush1.msra.mxu0 0.0
    %1204 = vmatprep.subr.mxu0 0.0
    %1205 = vmatpush1.msra.mxu0 0.0
    %1206 = vmatprep.subr.mxu0 0.0
    %1207 = vmatpush1.msra.mxu0 0.0
    %1208 = vmatprep.subr.mxu0 0.0
    %1209 = vmatpush1.msra.mxu0 0.0
    %1210 = vmatprep.subr.mxu0 0.0
    %1211 = vmatpush1.msra.mxu0 0.0
    %1212 = vmatprep.subr.mxu0 0.0
    %1213 = vmatpush1.msra.mxu0 0.0
    %1214 = vmatprep.subr.mxu0 0.0
    %1215 = vmatpush1.msra.mxu0 0.0
    %1216 = vmatprep.subr.mxu0 0.0
    %1217 = vmatpush1.msra.mxu0 0.0
    %1218 = vmatprep.subr.mxu0 0.0
    %1219 = vmatpush1.msra.mxu0 0.0
    %1220 = vmatprep.subr.mxu0 0.0
    %1221 = vmatpush1.msra.mxu0 0.0
    %1222 = vmatprep.subr.mxu0 0.0
    %1223 = vmatpush1.msra.mxu0 0.0
    %1224 = vmatprep.subr.mxu0 0.0
    %1225 = vmatpush1.msra.mxu0 0.0
    %1226 = vmatprep.subr.mxu0 0.0
    %1227 = vmatpush1.msra.mxu0 0.0
    %1228 = vmatprep.subr.mxu0 0.0
    %1229 = vmatpush1.msra.mxu0 0.0
    %1230 = vmatprep.subr.mxu0 0.0
    %1231 = vmatpush1.msra.mxu0 0.0
    %1232 = vmatprep.subr.mxu0 0.0
    %1233 = vmatpush1.msra.mxu0 0.0
    %1234 = vmatprep.subr.mxu0 0.0
    %1235 = vmatpush1.msra.mxu0 0.0
    %1236 = vmatprep.subr.mxu0 0.0
    %1237 = vmatpush1.msra.mxu0 0.0
    %1238 = vmatprep.subr.mxu0 0.0
    %1239 = vmatpush1.msra.mxu0 0.0
    %1240 = vmatprep.subr.mxu0 0.0
    %1241 = vmatpush1.msra.mxu0 0.0
    %1242 = vmatprep.subr.mxu0 0.0
    %1243 = vmatpush1.msra.mxu0 0.0
    %1244 = vmatprep.mubr.f32.mxu0 0.0
    %1245 = vmatmul.mubr.f32.gmra.mrb[0].mxu0 %v1175
    %v1246 = vpop.f32.mrb[0].mxu0
    %v1247 = vadd.f32 %v1172, %v1246
    %v1248 = vpop.f32.mrb[0].mxu0
    %1249 = vmatprep.mubr.f32.mxu0 0.0
    %1250 = vmatmul.mubr.f32.gmra.mrb[0].mxu0 %v1178
    %v1251 = vpop.f32.mrb[0].mxu0
    %v1252 = vadd.f32 %v1172, %v1251
    %v1253 = vpop.f32.mrb[0].mxu0
    %1254 = vdwg.mxu0
    %v1255 = vmul.f32 %v1247, %v282
    %v1256 = vmul.f32 %v1252, %v284
    %v1257 = vmul.f32 %v1247, %v286
    %v1258 = vmul.f32 %v1252, %v288
    %v1259 = vmul.f32 %v1247, %v290
    %v1260 = vmul.f32 %v1252, %v292
    %v1261 = vmul.f32 %v1247, %v294
    %v1262 = vmul.f32 %v1252, %v296
    %v1263 = vmul.f32 %v1247, %v314
    %v1264 = vmul.f32 %v1252, %v316
    %v1265 = vmul.f32 %v1247, %v318
    %v1266 = vmul.f32 %v1252, %v320
    %v1267 = vmul.f32 %v1247, %v322
    %v1268 = vmul.f32 %v1252, %v324
    %v1269 = vmul.f32 %v1247, %v326
    %v1270 = vmul.f32 %v1252, %v328
    %1279 = vrot.lane.b32.xlu0 %v1255, 96
    %v1280 = vpop.permute.xlu0 %1279
    %1281 = vrot.lane.b32.xlu0 %v1256, 96
    %v1282 = vpop.permute.xlu0 %1281
    %1283 = vrot.lane.b32.xlu0 %v1257, 96
    %v1284 = vpop.permute.xlu0 %1283
    %1285 = vrot.lane.b32.xlu0 %v1258, 96
    %v1286 = vpop.permute.xlu0 %1285
    %1287 = vrot.lane.b32.xlu0 %v1259, 96
    %v1288 = vpop.permute.xlu0 %1287
    %1289 = vrot.lane.b32.xlu0 %v1260, 96
    %v1290 = vpop.permute.xlu0 %1289
    %1291 = vrot.lane.b32.xlu0 %v1261, 96
    %v1292 = vpop.permute.xlu0 %1291
    %1293 = vrot.lane.b32.xlu0 %v1262, 96
    %v1294 = vpop.permute.xlu0 %1293
    %v1296 = vsel %vm83, %v1247, 0
    %v1299 = vsel %vm83, %v1252, 0
    %v1301 = vsel %vm83, %v1280, 0
    %v1303 = vsel %vm83, %v1282, 0
    %v1305 = vsel %vm83, %v1284, 0
    %v1307 = vsel %vm83, %v1286, 0
    %v1309 = vsel %vm83, %v1288, 0
    %v1311 = vsel %vm83, %v1290, 0
    %v1313 = vsel %vm83, %v1292, 0
    %v1315 = vsel %vm83, %v1294, 0
    %1317 = vmatprep.subr.mxu0 0.0
    %1318 = vmatpush1.xpose.msra.mxu0 %v1301
    %1319 = vmatprep.subr.mxu0 0.0
    %1320 = vmatpush1.xpose.msra.mxu0 %v1303
    %1321 = vmatprep.subr.mxu0 0.0
    %1322 = vmatpush1.xpose.msra.mxu0 %v1305
    %1323 = vmatprep.subr.mxu0 0.0
    %1324 = vmatpush1.xpose.msra.mxu0 %v1307
    %1325 = vmatprep.subr.mxu0 0.0
    %1326 = vmatpush1.xpose.msra.mxu0 %v1309
    %1327 = vmatprep.subr.mxu0 0.0
    %1328 = vmatpush1.xpose.msra.mxu0 %v1311
    %1329 = vmatprep.subr.mxu0 0.0
    %1330 = vmatpush1.xpose.msra.mxu0 %v1313
    %1331 = vmatprep.subr.mxu0 0.0
    %1332 = vmatpush1.xpose.msra.mxu0 %v1315
    %1333 = vmatprep.subr.mxu0 0.0
    %1334 = vmatpush1.xpose.msra.mxu0 0.0
    %1335 = vmatprep.subr.mxu0 0.0
    %1336 = vmatpush1.xpose.msra.mxu0 0.0
    %1337 = vmatprep.subr.mxu0 0.0
    %1338 = vmatpush1.xpose.msra.mxu0 0.0
    %1339 = vmatprep.subr.mxu0 0.0
    %1340 = vmatpush1.xpose.msra.mxu0 0.0
    %1341 = vmatprep.subr.mxu0 0.0
    %1342 = vmatpush1.xpose.msra.mxu0 0.0
    %1343 = vmatprep.subr.mxu0 0.0
    %1344 = vmatpush1.xpose.msra.mxu0 0.0
    %1345 = vmatprep.subr.mxu0 0.0
    %1346 = vmatpush1.xpose.msra.mxu0 0.0
    %1347 = vmatprep.subr.mxu0 0.0
    %1348 = vmatpush1.xpose.msra.mxu0 0.0
    %1349 = vmatprep.subr.mxu0 0.0
    %1350 = vmatpush1.xpose.msra.mxu0 0.0
    %1351 = vmatprep.subr.mxu0 0.0
    %1352 = vmatpush1.xpose.msra.mxu0 0.0
    %1353 = vmatprep.subr.mxu0 0.0
    %1354 = vmatpush1.xpose.msra.mxu0 0.0
    %1355 = vmatprep.subr.mxu0 0.0
    %1356 = vmatpush1.xpose.msra.mxu0 0.0
    %1357 = vmatprep.subr.mxu0 0.0
    %1358 = vmatpush1.xpose.msra.mxu0 0.0
    %1359 = vmatprep.subr.mxu0 0.0
    %1360 = vmatpush1.xpose.msra.mxu0 0.0
    %1361 = vmatprep.subr.mxu0 0.0
    %1362 = vmatpush1.xpose.msra.mxu0 0.0
    %1363 = vmatprep.subr.mxu0 0.0
    %1364 = vmatpush1.xpose.msra.mxu0 0.0
    %1365 = vmatprep.subr.mxu0 0.0
    %1366 = vmatpush1.xpose.msra.mxu0 0.0
    %1367 = vmatprep.subr.mxu0 0.0
    %1368 = vmatpush1.xpose.msra.mxu0 0.0
    %1369 = vmatprep.subr.mxu0 0.0
    %1370 = vmatpush1.xpose.msra.mxu0 0.0
    %1371 = vmatprep.subr.mxu0 0.0
    %1372 = vmatpush1.xpose.msra.mxu0 0.0
    %1373 = vmatprep.subr.mxu0 0.0
    %1374 = vmatpush1.xpose.msra.mxu0 0.0
    %1375 = vmatprep.subr.mxu0 0.0
    %1376 = vmatpush1.xpose.msra.mxu0 0.0
    %1377 = vmatprep.subr.mxu0 0.0
    %1378 = vmatpush1.xpose.msra.mxu0 0.0
    %1379 = vmatprep.subr.mxu0 0.0
    %1380 = vmatpush1.xpose.msra.mxu0 0.0
    %1381 = vmatprep.mubr.f32.mxu0 0.0
    %1382 = vmatmul.mubr.f32.gmra.mrb[0].mxu0 %v1296
    %v1383 = vpop.f32.mrb[0].mxu0
    %v1384 = vadd.f32 0.0, %v1383
    %v1385 = vpop.f32.mrb[0].mxu0
    %1386 = vmatprep.mubr.f32.mxu0 0.0
    %1387 = vmatmul.mubr.f32.gmra.mrb[0].mxu0 %v1299
    %v1388 = vpop.f32.mrb[0].mxu0
    %v1389 = vadd.f32 0.0, %v1388
    %v1390 = vpop.f32.mrb[0].mxu0
    %1391 = vmatprep.mubr.f32.mxu0 0.0
    %1392 = vmatmul.mubr.f32.gmra.mrb[0].mxu0 %v1296
    %v1393 = vpop.f32.mrb[0].mxu0
    %v1394 = vadd.f32 0.0, %v1393
    %v1395 = vpop.f32.mrb[0].mxu0
    %1396 = vmatprep.mubr.f32.mxu0 0.0
    %1397 = vmatmul.mubr.f32.gmra.mrb[0].mxu0 %v1299
    %v1398 = vpop.f32.mrb[0].mxu0
    %v1399 = vadd.f32 0.0, %v1398
    %v1400 = vpop.f32.mrb[0].mxu0
    %1401 = vmatprep.mubr.f32.mxu0 0.0
    %1402 = vmatmul.mubr.f32.gmra.mrb[0].mxu0 %v1296
    %v1403 = vpop.f32.mrb[0].mxu0
    %v1404 = vadd.f32 0.0, %v1403
    %v1405 = vpop.f32.mrb[0].mxu0
    %1406 = vmatprep.mubr.f32.mxu0 0.0
    %1407 = vmatmul.mubr.f32.gmra.mrb[0].mxu0 %v1299
    %v1408 = vpop.f32.mrb[0].mxu0
    %v1409 = vadd.f32 0.0, %v1408
    %v1410 = vpop.f32.mrb[0].mxu0
    %1411 = vmatprep.mubr.f32.mxu0 0.0
    %1412 = vmatmul.mubr.f32.gmra.mrb[0].mxu0 %v1296
    %v1413 = vpop.f32.mrb[0].mxu0
    %v1414 = vadd.f32 0.0, %v1413
    %v1415 = vpop.f32.mrb[0].mxu0
    %1416 = vmatprep.mubr.f32.mxu0 0.0
    %1417 = vmatmul.mubr.f32.gmra.mrb[0].mxu0 %v1299
    %v1418 = vpop.f32.mrb[0].mxu0
    %v1419 = vadd.f32 0.0, %v1418
    %v1420 = vpop.f32.mrb[0].mxu0
    %1421 = vdwg.mxu0
    %v1422 = vmul.f32 %v1384, 0.35355338
    %v1423 = vmul.f32 %v1389, 0.35355338
    %v1424 = vmul.f32 %v1394, 0.35355338
    %v1425 = vmul.f32 %v1399, 0.35355338
    %v1426 = vmul.f32 %v1404, 0.35355338
    %v1427 = vmul.f32 %v1409, 0.35355338
    %v1428 = vmul.f32 %v1414, 0.35355338
    %v1429 = vmul.f32 %v1419, 0.35355338
    %v1430 = vadd.f32 %v1422, %v165
    %v1431 = vadd.f32 %v1423, %v166
    %v1432 = vadd.f32 %v1424, %v167
    %v1433 = vadd.f32 %v1425, %v168
    %v1434 = vadd.f32 %v1426, %v169
    %v1435 = vadd.f32 %v1427, %v170
    %v1436 = vadd.f32 %v1428, %v171
    %v1437 = vadd.f32 %v1429, %v172
    %v1438 = vsel %vm512, %v1430, -inf
    %1439 = vmax.xlane.f32.xlu0 %v1438
    %v1440 = vpop.xlane.xlu0 %1439
    %v1441 = vsel %vm512, %v1431, -inf
    %1442 = vmax.xlane.f32.xlu0 %v1441
    %v1443 = vpop.xlane.xlu0 %1442
    %v1444 = vsel %vm512, %v1432, -inf
    %1445 = vmax.xlane.f32.xlu0 %v1444
    %v1446 = vpop.xlane.xlu0 %1445
    %v1447 = vsel %vm512, %v1433, -inf
    %1448 = vmax.xlane.f32.xlu0 %v1447
    %v1449 = vpop.xlane.xlu0 %1448
    %v1450 = vsel %vm512, %v1434, -inf
    %1451 = vmax.xlane.f32.xlu0 %v1450
    %v1452 = vpop.xlane.xlu0 %1451
    %v1453 = vsel %vm512, %v1435, -inf
    %1454 = vmax.xlane.f32.xlu0 %v1453
    %v1455 = vpop.xlane.xlu0 %1454
    %v1456 = vsel %vm512, %v1436, -inf
    %1457 = vmax.xlane.f32.xlu0 %v1456
    %v1458 = vpop.xlane.xlu0 %1457
    %v1459 = vsel %vm512, %v1437, -inf
    %1460 = vmax.xlane.f32.xlu0 %v1459
    %v1461 = vpop.xlane.xlu0 %1460
    %v1462 = vsub.f32 %v1430, %v1440
    %v1463 = vsub.f32 %v1431, %v1443
    %v1464 = vsub.f32 %v1432, %v1446
    %v1465 = vsub.f32 %v1433, %v1449
    %v1466 = vsub.f32 %v1434, %v1452
    %v1467 = vsub.f32 %v1435, %v1455
    %v1468 = vsub.f32 %v1436, %v1458
    %v1469 = vsub.f32 %v1437, %v1461
    %v1470 = vmul.f32 %v1462, 1.442695
    %v1471 = vpow.pop %v1470
    %v1472 = vmul.f32 %v1463, 1.442695
    %v1473 = vpow.pop %v1472
    %v1474 = vmul.f32 %v1464, 1.442695
    %v1475 = vpow.pop %v1474
    %v1476 = vmul.f32 %v1465, 1.442695
    %v1477 = vpow.pop %v1476
    %v1478 = vmul.f32 %v1466, 1.442695
    %v1479 = vpow.pop %v1478
    %v1480 = vmul.f32 %v1467, 1.442695
    %v1481 = vpow.pop %v1480
    %v1482 = vmul.f32 %v1468, 1.442695
    %v1483 = vpow.pop %v1482
    %v1484 = vmul.f32 %v1469, 1.442695
    %v1485 = vpow.pop %v1484
    %v1486 = vsel %vm512, %v1471, 0.0
    %1487 = vadd.xlane.f32.xlu0 %v1486
    %v1488 = vpop.xlane.xlu0 %1487
    %v1489 = vsel %vm512, %v1473, 0.0
    %1490 = vadd.xlane.f32.xlu0 %v1489
    %v1491 = vpop.xlane.xlu0 %1490
    %v1492 = vsel %vm512, %v1475, 0.0
    %1493 = vadd.xlane.f32.xlu0 %v1492
    %v1494 = vpop.xlane.xlu0 %1493
    %v1495 = vsel %vm512, %v1477, 0.0
    %1496 = vadd.xlane.f32.xlu0 %v1495
    %v1497 = vpop.xlane.xlu0 %1496
    %v1498 = vsel %vm512, %v1479, 0.0
    %1499 = vadd.xlane.f32.xlu0 %v1498
    %v1500 = vpop.xlane.xlu0 %1499
    %v1501 = vsel %vm512, %v1481, 0.0
    %1502 = vadd.xlane.f32.xlu0 %v1501
    %v1503 = vpop.xlane.xlu0 %1502
    %v1504 = vsel %vm512, %v1483, 0.0
    %1505 = vadd.xlane.f32.xlu0 %v1504
    %v1506 = vpop.xlane.xlu0 %1505
    %v1507 = vsel %vm512, %v1485, 0.0
    %1508 = vadd.xlane.f32.xlu0 %v1507
    %v1509 = vpop.xlane.xlu0 %1508
    %v1510 = vrcp.pop %v1488
    %v1511 = vrcp.pop %v1491
    %v1512 = vrcp.pop %v1494
    %v1513 = vrcp.pop %v1497
    %v1514 = vrcp.pop %v1500
    %v1515 = vrcp.pop %v1503
    %v1516 = vrcp.pop %v1506
    %v1517 = vrcp.pop %v1509
    %v1518 = vmul.f32 %v1471, %v1510
    %v1519 = vmul.f32 %v1473, %v1511
    %v1520 = vmul.f32 %v1475, %v1512
    %v1521 = vmul.f32 %v1477, %v1513
    %v1522 = vmul.f32 %v1479, %v1514
    %v1523 = vmul.f32 %v1481, %v1515
    %v1524 = vmul.f32 %v1483, %v1516
    %v1525 = vmul.f32 %v1485, %v1517
    %1534 = vrot.lane.b32.xlu0 %v1263, 64
    %v1535 = vpop.permute.xlu0 %1534
    %1536 = vrot.lane.b32.xlu0 %v1264, 64
    %v1537 = vpop.permute.xlu0 %1536
    %1538 = vrot.lane.b32.xlu0 %v1265, 64
    %v1539 = vpop.permute.xlu0 %1538
    %1540 = vrot.lane.b32.xlu0 %v1266, 64
    %v1541 = vpop.permute.xlu0 %1540
    %1542 = vrot.lane.b32.xlu0 %v1267, 64
    %v1543 = vpop.permute.xlu0 %1542
    %1544 = vrot.lane.b32.xlu0 %v1268, 64
    %v1545 = vpop.permute.xlu0 %1544
    %1546 = vrot.lane.b32.xlu0 %v1269, 64
    %v1547 = vpop.permute.xlu0 %1546
    %1548 = vrot.lane.b32.xlu0 %v1270, 64
    %v1549 = vpop.permute.xlu0 %1548
    %v1559 = vsel %vm512, %v1518, 0
    %v1562 = vsel %vm512, %v1519, 0
    %v1565 = vsel %vm512, %v1520, 0
    %v1568 = vsel %vm512, %v1521, 0
    %v1571 = vsel %vm512, %v1522, 0
    %v1574 = vsel %vm512, %v1523, 0
    %v1577 = vsel %vm512, %v1524, 0
    %v1580 = vsel %vm512, %v1525, 0
    %1582 = vmatprep.subr.mxu0 0.0
    %1583 = vmatpush1.msra.mxu0 %v1535
    %1584 = vmatprep.subr.mxu0 0.0
    %1585 = vmatpush1.msra.mxu0 %v1537
    %1586 = vmatprep.subr.mxu0 0.0
    %1587 = vmatpush1.msra.mxu0 %v1539
    %1588 = vmatprep.subr.mxu0 0.0
    %1589 = vmatpush1.msra.mxu0 %v1541
    %1590 = vmatprep.subr.mxu0 0.0
    %1591 = vmatpush1.msra.mxu0 %v1543
    %1592 = vmatprep.subr.mxu0 0.0
    %1593 = vmatpush1.msra.mxu0 %v1545
    %1594 = vmatprep.subr.mxu0 0.0
    %1595 = vmatpush1.msra.mxu0 %v1547
    %1596 = vmatprep.subr.mxu0 0.0
    %1597 = vmatpush1.msra.mxu0 %v1549
    %1598 = vmatprep.subr.mxu0 0.0
    %1599 = vmatpush1.msra.mxu0 0.0
    %1600 = vmatprep.subr.mxu0 0.0
    %1601 = vmatpush1.msra.mxu0 0.0
    %1602 = vmatprep.subr.mxu0 0.0
    %1603 = vmatpush1.msra.mxu0 0.0
    %1604 = vmatprep.subr.mxu0 0.0
    %1605 = vmatpush1.msra.mxu0 0.0
    %1606 = vmatprep.subr.mxu0 0.0
    %1607 = vmatpush1.msra.mxu0 0.0
    %1608 = vmatprep.subr.mxu0 0.0
    %1609 = vmatpush1.msra.mxu0 0.0
    %1610 = vmatprep.subr.mxu0 0.0
    %1611 = vmatpush1.msra.mxu0 0.0
    %1612 = vmatprep.subr.mxu0 0.0
    %1613 = vmatpush1.msra.mxu0 0.0
    %1614 = vmatprep.subr.mxu0 0.0
    %1615 = vmatpush1.msra.mxu0 0.0
    %1616 = vmatprep.subr.mxu0 0.0
    %1617 = vmatpush1.msra.mxu0 0.0
    %1618 = vmatprep.subr.mxu0 0.0
    %1619 = vmatpush1.msra.mxu0 0.0
    %1620 = vmatprep.subr.mxu0 0.0
    %1621 = vmatpush1.msra.mxu0 0.0
    %1622 = vmatprep.subr.mxu0 0.0
    %1623 = vmatpush1.msra.mxu0 0.0
    %1624 = vmatprep.subr.mxu0 0.0
    %1625 = vmatpush1.msra.mxu0 0.0
    %1626 = vmatprep.subr.mxu0 0.0
    %1627 = vmatpush1.msra.mxu0 0.0
    %1628 = vmatprep.subr.mxu0 0.0
    %1629 = vmatpush1.msra.mxu0 0.0
    %1630 = vmatprep.subr.mxu0 0.0
    %1631 = vmatpush1.msra.mxu0 0.0
    %1632 = vmatprep.subr.mxu0 0.0
    %1633 = vmatpush1.msra.mxu0 0.0
    %1634 = vmatprep.subr.mxu0 0.0
    %1635 = vmatpush1.msra.mxu0 0.0
    %1636 = vmatprep.subr.mxu0 0.0
    %1637 = vmatpush1.msra.mxu0 0.0
    %1638 = vmatprep.subr.mxu0 0.0
    %1639 = vmatpush1.msra.mxu0 0.0
    %1640 = vmatprep.subr.mxu0 0.0
    %1641 = vmatpush1.msra.mxu0 0.0
    %1642 = vmatprep.subr.mxu0 0.0
    %1643 = vmatpush1.msra.mxu0 0.0
    %1644 = vmatprep.subr.mxu0 0.0
    %1645 = vmatpush1.msra.mxu0 0.0
    %1646 = vmatprep.mubr.f32.mxu0 0.0
    %1647 = vmatmul.mubr.f32.gmra.mrb[0].mxu0 %v1559
    %v1648 = vpop.f32.mrb[0].mxu0
    %v1649 = vadd.f32 0.0, %v1648
    %v1650 = vpop.f32.mrb[0].mxu0
    %1651 = vmatprep.mubr.f32.mxu0 0.0
    %1652 = vmatmul.mubr.f32.gmra.mrb[0].mxu0 %v1562
    %v1653 = vpop.f32.mrb[0].mxu0
    %v1654 = vadd.f32 0.0, %v1653
    %v1655 = vpop.f32.mrb[0].mxu0
    %1656 = vmatprep.mubr.f32.mxu0 0.0
    %1657 = vmatmul.mubr.f32.gmra.mrb[0].mxu0 %v1565
    %v1658 = vpop.f32.mrb[0].mxu0
    %v1659 = vadd.f32 0.0, %v1658
    %v1660 = vpop.f32.mrb[0].mxu0
    %1661 = vmatprep.mubr.f32.mxu0 0.0
    %1662 = vmatmul.mubr.f32.gmra.mrb[0].mxu0 %v1568
    %v1663 = vpop.f32.mrb[0].mxu0
    %v1664 = vadd.f32 0.0, %v1663
    %v1665 = vpop.f32.mrb[0].mxu0
    %1666 = vmatprep.mubr.f32.mxu0 0.0
    %1667 = vmatmul.mubr.f32.gmra.mrb[0].mxu0 %v1571
    %v1668 = vpop.f32.mrb[0].mxu0
    %v1669 = vadd.f32 0.0, %v1668
    %v1670 = vpop.f32.mrb[0].mxu0
    %1671 = vmatprep.mubr.f32.mxu0 0.0
    %1672 = vmatmul.mubr.f32.gmra.mrb[0].mxu0 %v1574
    %v1673 = vpop.f32.mrb[0].mxu0
    %v1674 = vadd.f32 0.0, %v1673
    %v1675 = vpop.f32.mrb[0].mxu0
    %1676 = vmatprep.mubr.f32.mxu0 0.0
    %1677 = vmatmul.mubr.f32.gmra.mrb[0].mxu0 %v1577
    %v1678 = vpop.f32.mrb[0].mxu0
    %v1679 = vadd.f32 0.0, %v1678
    %v1680 = vpop.f32.mrb[0].mxu0
    %1681 = vmatprep.mubr.f32.mxu0 0.0
    %1682 = vmatmul.mubr.f32.gmra.mrb[0].mxu0 %v1580
    %v1683 = vpop.f32.mrb[0].mxu0
    %v1684 = vadd.f32 0.0, %v1683
    %v1685 = vpop.f32.mrb[0].mxu0
    %1686 = vdwg.mxu0
    %v1687 = vadd.f32 %v1649, %v1659
    %v1688 = vadd.f32 %v1654, %v1664
    %v1689 = vadd.f32 %v1687, %v1669
    %v1690 = vadd.f32 %v1688, %v1674
    %v1691 = vadd.f32 %v1689, %v1679
    %v1692 = vadd.f32 %v1690, %v1684
    %s1693 = scalar_lea.vmem %s7, 32
    %v1694 = vld [vmem:[%s1693] sm:$0xff]
    %v1695 = vld [vmem:[%s1693 + $0x8] sm:$0xff]
    %v1696 = vld [vmem:[%s1693 + $0x10] sm:$0xff]
    %v1697 = vld [vmem:[%s1693 + $0x18] sm:$0xff]
    %s1698 = scalar_lea.vmem %s8, 1
    %v1699 = vld [vmem:[%s1698] sm:$0x1]
    %v1701 = vlaneseq
    %v1702 = vshrl.u32 %v1701, 7
    %v1703 = vsub.s32 0, %v1702
    %v1704 = vrot.slane %v1699, %v1703
    %v1707 = vsel %vm83, %v1691, 0
    %v1710 = vsel %vm83, %v1692, 0
    %1712 = vmatprep.subr.mxu0 0.0
    %1713 = vmatpush1.msra.mxu0 %v1694
    %1714 = vmatprep.subr.mxu0 0.0
    %1715 = vmatpush1.msra.mxu0 %v1695
    %1716 = vmatprep.subr.mxu0 0.0
    %1717 = vmatpush1.msra.mxu0 %v1696
    %1718 = vmatprep.subr.mxu0 0.0
    %1719 = vmatpush1.msra.mxu0 %v1697
    %1720 = vmatprep.subr.mxu0 0.0
    %1721 = vmatpush1.msra.mxu0 0.0
    %1722 = vmatprep.subr.mxu0 0.0
    %1723 = vmatpush1.msra.mxu0 0.0
    %1724 = vmatprep.subr.mxu0 0.0
    %1725 = vmatpush1.msra.mxu0 0.0
    %1726 = vmatprep.subr.mxu0 0.0
    %1727 = vmatpush1.msra.mxu0 0.0
    %1728 = vmatprep.subr.mxu0 0.0
    %1729 = vmatpush1.msra.mxu0 0.0
    %1730 = vmatprep.subr.mxu0 0.0
    %1731 = vmatpush1.msra.mxu0 0.0
    %1732 = vmatprep.subr.mxu0 0.0
    %1733 = vmatpush1.msra.mxu0 0.0
    %1734 = vmatprep.subr.mxu0 0.0
    %1735 = vmatpush1.msra.mxu0 0.0
    %1736 = vmatprep.subr.mxu0 0.0
    %1737 = vmatpush1.msra.mxu0 0.0
    %1738 = vmatprep.subr.mxu0 0.0
    %1739 = vmatpush1.msra.mxu0 0.0
    %1740 = vmatprep.subr.mxu0 0.0
    %1741 = vmatpush1.msra.mxu0 0.0
    %1742 = vmatprep.subr.mxu0 0.0
    %1743 = vmatpush1.msra.mxu0 0.0
    %1744 = vmatprep.subr.mxu0 0.0
    %1745 = vmatpush1.msra.mxu0 0.0
    %1746 = vmatprep.subr.mxu0 0.0
    %1747 = vmatpush1.msra.mxu0 0.0
    %1748 = vmatprep.subr.mxu0 0.0
    %1749 = vmatpush1.msra.mxu0 0.0
    %1750 = vmatprep.subr.mxu0 0.0
    %1751 = vmatpush1.msra.mxu0 0.0
    %1752 = vmatprep.subr.mxu0 0.0
    %1753 = vmatpush1.msra.mxu0 0.0
    %1754 = vmatprep.subr.mxu0 0.0
    %1755 = vmatpush1.msra.mxu0 0.0
    %1756 = vmatprep.subr.mxu0 0.0
    %1757 = vmatpush1.msra.mxu0 0.0
    %1758 = vmatprep.subr.mxu0 0.0
    %1759 = vmatpush1.msra.mxu0 0.0
    %1760 = vmatprep.subr.mxu0 0.0
    %1761 = vmatpush1.msra.mxu0 0.0
    %1762 = vmatprep.subr.mxu0 0.0
    %1763 = vmatpush1.msra.mxu0 0.0
    %1764 = vmatprep.subr.mxu0 0.0
    %1765 = vmatpush1.msra.mxu0 0.0
    %1766 = vmatprep.subr.mxu0 0.0
    %1767 = vmatpush1.msra.mxu0 0.0
    %1768 = vmatprep.subr.mxu0 0.0
    %1769 = vmatpush1.msra.mxu0 0.0
    %1770 = vmatprep.subr.mxu0 0.0
    %1771 = vmatpush1.msra.mxu0 0.0
    %1772 = vmatprep.subr.mxu0 0.0
    %1773 = vmatpush1.msra.mxu0 0.0
    %1774 = vmatprep.subr.mxu0 0.0
    %1775 = vmatpush1.msra.mxu0 0.0
    %1776 = vmatprep.mubr.f32.mxu0 0.0
    %1777 = vmatmul.mubr.f32.gmra.mrb[0].mxu0 %v1707
    %v1778 = vpop.f32.mrb[0].mxu0
    %v1779 = vadd.f32 %v1704, %v1778
    %v1780 = vpop.f32.mrb[0].mxu0
    %1781 = vmatprep.mubr.f32.mxu0 0.0
    %1782 = vmatmul.mubr.f32.gmra.mrb[0].mxu0 %v1710
    %v1783 = vpop.f32.mrb[0].mxu0
    %v1784 = vadd.f32 %v1704, %v1783
    %v1785 = vpop.f32.mrb[0].mxu0
    %1786 = vdwg.mxu0
    %v1787 = vadd.f32 %v1159, %v1779
    %v1788 = vadd.f32 %v1160, %v1784
    %s1789 = scalar_lea.vmem %s9, 1
    %v1790 = vld [vmem:[%s1789] sm:$0x1]
    %s1791 = scalar_lea.vmem %s10, 1
    %v1792 = vld [vmem:[%s1791] sm:$0x1]
    %v1793 = vsel %vm83, %v1787, 0.0
    %1794 = vadd.xlane.f32.xlu0 %v1793
    %v1795 = vpop.xlane.xlu0 %1794
    %v1796 = vsel %vm83, %v1788, 0.0
    %1797 = vadd.xlane.f32.xlu0 %v1796
    %v1798 = vpop.xlane.xlu0 %1797
    %v1799 = vmul.f32 %v1795, %v870
    %v1800 = vmul.f32 %v1798, %v870
    %v1801 = vsub.f32 %v1787, %v1799
    %v1802 = vsub.f32 %v1788, %v1800
    %v1803 = vmul.f32 %v1801, %v1801
    %v1804 = vmul.f32 %v1802, %v1802
    %v1805 = vsel %vm83, %v1803, 0.0
    %1806 = vadd.xlane.f32.xlu0 %v1805
    %v1807 = vpop.xlane.xlu0 %1806
    %v1808 = vsel %vm83, %v1804, 0.0
    %1809 = vadd.xlane.f32.xlu0 %v1808
    %v1810 = vpop.xlane.xlu0 %1809
    %v1811 = vmul.f32 %v1807, %v870
    %v1812 = vmul.f32 %v1810, %v870
    %v1813 = vadd.f32 %v1811, 1e-05
    %v1814 = vadd.f32 %v1812, 1e-05
    %v1815 = vrsqrt.pop %v1813
    %v1816 = vrsqrt.pop %v1814
    %v1817 = vmul.f32 %v1801, %v1815
    %v1818 = vmul.f32 %v1802, %v1816
    %v1820 = vlaneseq
    %v1821 = vshrl.u32 %v1820, 7
    %v1822 = vsub.s32 0, %v1821
    %v1823 = vrot.slane %v1790, %v1822
    %v1825 = vmul.f32 %v1817, %v1823
    %v1826 = vmul.f32 %v1818, %v1823
    %v1828 = vlaneseq
    %v1829 = vshrl.u32 %v1828, 7
    %v1830 = vsub.s32 0, %v1829
    %v1831 = vrot.slane %v1792, %v1830
    %v1833 = vadd.f32 %v1825, %v1831
    %v1834 = vadd.f32 %v1826, %v1831
    %s1835 = scalar_lea.vmem %s11, 32
    %v1836 = vld [vmem:[%s1835] sm:$0xff]
    %v1837 = vld [vmem:[%s1835 + $0x8] sm:$0xff]
    %v1838 = vld [vmem:[%s1835 + $0x10] sm:$0xff]
    %v1839 = vld [vmem:[%s1835 + $0x18] sm:$0xff]
    %s1840 = scalar_lea.vmem %s12, 1
    %v1841 = vld [vmem:[%s1840] sm:$0x1]
    %v1843 = vlaneseq
    %v1844 = vshrl.u32 %v1843, 7
    %v1845 = vsub.s32 0, %v1844
    %v1846 = vrot.slane %v1841, %v1845
    %v1849 = vsel %vm83, %v1833, 0
    %v1852 = vsel %vm83, %v1834, 0
    %1854 = vmatprep.subr.mxu0 0.0
    %1855 = vmatpush1.msra.mxu0 %v1836
    %1856 = vmatprep.subr.mxu0 0.0
    %1857 = vmatpush1.msra.mxu0 %v1837
    %1858 = vmatprep.subr.mxu0 0.0
    %1859 = vmatpush1.msra.mxu0 %v1838
    %1860 = vmatprep.subr.mxu0 0.0
    %1861 = vmatpush1.msra.mxu0 %v1839
    %1862 = vmatprep.subr.mxu0 0.0
    %1863 = vmatpush1.msra.mxu0 0.0
    %1864 = vmatprep.subr.mxu0 0.0
    %1865 = vmatpush1.msra.mxu0 0.0
    %1866 = vmatprep.subr.mxu0 0.0
    %1867 = vmatpush1.msra.mxu0 0.0
    %1868 = vmatprep.subr.mxu0 0.0
    %1869 = vmatpush1.msra.mxu0 0.0
    %1870 = vmatprep.subr.mxu0 0.0
    %1871 = vmatpush1.msra.mxu0 0.0
    %1872 = vmatprep.subr.mxu0 0.0
    %1873 = vmatpush1.msra.mxu0 0.0
    %1874 = vmatprep.subr.mxu0 0.0
    %1875 = vmatpush1.msra.mxu0 0.0
    %1876 = vmatprep.subr.mxu0 0.0
    %1877 = vmatpush1.msra.mxu0 0.0
    %1878 = vmatprep.subr.mxu0 0.0
    %1879 = vmatpush1.msra.mxu0 0.0
    %1880 = vmatprep.subr.mxu0 0.0
    %1881 = vmatpush1.msra.mxu0 0.0
    %1882 = vmatprep.subr.mxu0 0.0
    %1883 = vmatpush1.msra.mxu0 0.0
    %1884 = vmatprep.subr.mxu0 0.0
    %1885 = vmatpush1.msra.mxu0 0.0
    %1886 = vmatprep.subr.mxu0 0.0
    %1887 = vmatpush1.msra.mxu0 0.0
    %1888 = vmatprep.subr.mxu0 0.0
    %1889 = vmatpush1.msra.mxu0 0.0
    %1890 = vmatprep.subr.mxu0 0.0
    %1891 = vmatpush1.msra.mxu0 0.0
    %1892 = vmatprep.subr.mxu0 0.0
    %1893 = vmatpush1.msra.mxu0 0.0
    %1894 = vmatprep.subr.mxu0 0.0
    %1895 = vmatpush1.msra.mxu0 0.0
    %1896 = vmatprep.subr.mxu0 0.0
    %1897 = vmatpush1.msra.mxu0 0.0
    %1898 = vmatprep.subr.mxu0 0.0
    %1899 = vmatpush1.msra.mxu0 0.0
    %1900 = vmatprep.subr.mxu0 0.0
    %1901 = vmatpush1.msra.mxu0 0.0
    %1902 = vmatprep.subr.mxu0 0.0
    %1903 = vmatpush1.msra.mxu0 0.0
    %1904 = vmatprep.subr.mxu0 0.0
    %1905 = vmatpush1.msra.mxu0 0.0
    %1906 = vmatprep.subr.mxu0 0.0
    %1907 = vmatpush1.msra.mxu0 0.0
    %1908 = vmatprep.subr.mxu0 0.0
    %1909 = vmatpush1.msra.mxu0 0.0
    %1910 = vmatprep.subr.mxu0 0.0
    %1911 = vmatpush1.msra.mxu0 0.0
    %1912 = vmatprep.subr.mxu0 0.0
    %1913 = vmatpush1.msra.mxu0 0.0
    %1914 = vmatprep.subr.mxu0 0.0
    %1915 = vmatpush1.msra.mxu0 0.0
    %1916 = vmatprep.subr.mxu0 0.0
    %1917 = vmatpush1.msra.mxu0 0.0
    %1918 = vmatprep.mubr.f32.mxu0 0.0
    %1919 = vmatmul.mubr.f32.gmra.mrb[0].mxu0 %v1849
    %v1920 = vpop.f32.mrb[0].mxu0
    %v1921 = vadd.f32 %v1846, %v1920
    %v1922 = vpop.f32.mrb[0].mxu0
    %1923 = vmatprep.mubr.f32.mxu0 0.0
    %1924 = vmatmul.mubr.f32.gmra.mrb[0].mxu0 %v1852
    %v1925 = vpop.f32.mrb[0].mxu0
    %v1926 = vadd.f32 %v1846, %v1925
    %v1927 = vpop.f32.mrb[0].mxu0
    %1928 = vdwg.mxu0
    %v1929 = vmul.f32 %v1921, 0.5
    %v1930 = vmul.f32 %v1926, 0.5
    %v1931 = vmul.f32 %v1921, 0.044715
    %v1932 = vmul.f32 %v1926, 0.044715
    %v1933 = vmul.f32 %v1931, %v1921
    %v1934 = vmul.f32 %v1932, %v1926
    %v1935 = vmul.f32 %v1933, %v1921
    %v1936 = vmul.f32 %v1934, %v1926
    %v1937 = vadd.f32 %v1921, %v1935
    %v1938 = vadd.f32 %v1926, %v1936
    %v1939 = vmul.f32 %v1937, 0.7978846
    %v1940 = vmul.f32 %v1938, 0.7978846
    %v1941 = vtanh.pop %v1939
    %v1942 = vtanh.pop %v1940
    %v1943 = vadd.f32 %v1941, 1.0
    %v1944 = vadd.f32 %v1942, 1.0
    %v1945 = vmul.f32 %v1929, %v1943
    %v1946 = vmul.f32 %v1930, %v1944
    %s1947 = scalar_lea.vmem %s13, 128
    %v1948 = vld [vmem:[%s1947] sm:$0xff]
    %v1949 = vld [vmem:[%s1947 + $0x8] sm:$0xff]
    %v1950 = vld [vmem:[%s1947 + $0x10] sm:$0xff]
    %v1951 = vld [vmem:[%s1947 + $0x18] sm:$0xff]
    %v1952 = vld [vmem:[%s1947 + $0x20] sm:$0xff]
    %v1953 = vld [vmem:[%s1947 + $0x28] sm:$0xff]
    %v1954 = vld [vmem:[%s1947 + $0x30] sm:$0xff]
    %v1955 = vld [vmem:[%s1947 + $0x38] sm:$0xff]
    %v1956 = vld [vmem:[%s1947 + $0x40] sm:$0xff]
    %v1957 = vld [vmem:[%s1947 + $0x48] sm:$0xff]
    %v1958 = vld [vmem:[%s1947 + $0x50] sm:$0xff]
    %v1959 = vld [vmem:[%s1947 + $0x58] sm:$0xff]
    %v1960 = vld [vmem:[%s1947 + $0x60] sm:$0xff]
    %v1961 = vld [vmem:[%s1947 + $0x68] sm:$0xff]
    %v1962 = vld [vmem:[%s1947 + $0x70] sm:$0xff]
    %v1963 = vld [vmem:[%s1947 + $0x78] sm:$0xff]
    %s1964 = scalar_lea.vmem %s14, 1
    %v1965 = vld [vmem:[%s1964] sm:$0x1]
    %v1967 = vlaneseq
    %v1968 = vshrl.u32 %v1967, 7
    %v1969 = vsub.s32 0, %v1968
    %v1970 = vrot.slane %v1965, %v1969
    %1972 = vmatprep.subr.mxu0 0.0
    %1973 = vmatpush1.msra.mxu0 %v1948
    %1974 = vmatprep.subr.mxu0 0.0
    %1975 = vmatpush1.msra.mxu0 %v1949
    %1976 = vmatprep.subr.mxu0 0.0
    %1977 = vmatpush1.msra.mxu0 %v1950
    %1978 = vmatprep.subr.mxu0 0.0
    %1979 = vmatpush1.msra.mxu0 %v1951
    %1980 = vmatprep.subr.mxu0 0.0
    %1981 = vmatpush1.msra.mxu0 %v1952
    %1982 = vmatprep.subr.mxu0 0.0
    %1983 = vmatpush1.msra.mxu0 %v1953
    %1984 = vmatprep.subr.mxu0 0.0
    %1985 = vmatpush1.msra.mxu0 %v1954
    %1986 = vmatprep.subr.mxu0 0.0
    %1987 = vmatpush1.msra.mxu0 %v1955
    %1988 = vmatprep.subr.mxu0 0.0
    %1989 = vmatpush1.msra.mxu0 %v1956
    %1990 = vmatprep.subr.mxu0 0.0
    %1991 = vmatpush1.msra.mxu0 %v1957
    %1992 = vmatprep.subr.mxu0 0.0
    %1993 = vmatpush1.msra.mxu0 %v1958
    %1994 = vmatprep.subr.mxu0 0.0
    %1995 = vmatpush1.msra.mxu0 %v1959
    %1996 = vmatprep.subr.mxu0 0.0
    %1997 = vmatpush1.msra.mxu0 %v1960
    %1998 = vmatprep.subr.mxu0 0.0
    %1999 = vmatpush1.msra.mxu0 %v1961
    %2000 = vmatprep.subr.mxu0 0.0
    %2001 = vmatpush1.msra.mxu0 %v1962
    %2002 = vmatprep.subr.mxu0 0.0
    %2003 = vmatpush1.msra.mxu0 %v1963
    %2004 = vmatprep.subr.mxu0 0.0
    %2005 = vmatpush1.msra.mxu0 0.0
    %2006 = vmatprep.subr.mxu0 0.0
    %2007 = vmatpush1.msra.mxu0 0.0
    %2008 = vmatprep.subr.mxu0 0.0
    %2009 = vmatpush1.msra.mxu0 0.0
    %2010 = vmatprep.subr.mxu0 0.0
    %2011 = vmatpush1.msra.mxu0 0.0
    %2012 = vmatprep.subr.mxu0 0.0
    %2013 = vmatpush1.msra.mxu0 0.0
    %2014 = vmatprep.subr.mxu0 0.0
    %2015 = vmatpush1.msra.mxu0 0.0
    %2016 = vmatprep.subr.mxu0 0.0
    %2017 = vmatpush1.msra.mxu0 0.0
    %2018 = vmatprep.subr.mxu0 0.0
    %2019 = vmatpush1.msra.mxu0 0.0
    %2020 = vmatprep.subr.mxu0 0.0
    %2021 = vmatpush1.msra.mxu0 0.0
    %2022 = vmatprep.subr.mxu0 0.0
    %2023 = vmatpush1.msra.mxu0 0.0
    %2024 = vmatprep.subr.mxu0 0.0
    %2025 = vmatpush1.msra.mxu0 0.0
    %2026 = vmatprep.subr.mxu0 0.0
    %2027 = vmatpush1.msra.mxu0 0.0
    %2028 = vmatprep.subr.mxu0 0.0
    %2029 = vmatpush1.msra.mxu0 0.0
    %2030 = vmatprep.subr.mxu0 0.0
    %2031 = vmatpush1.msra.mxu0 0.0
    %2032 = vmatprep.subr.mxu0 0.0
    %2033 = vmatpush1.msra.mxu0 0.0
    %2034 = vmatprep.subr.mxu0 0.0
    %2035 = vmatpush1.msra.mxu0 0.0
    %2036 = vmatprep.mubr.f32.mxu0 0.0
    %2037 = vmatmul.mubr.f32.gmra.mrb[0].mxu0 %v1945
    %v2038 = vpop.f32.mrb[0].mxu0
    %v2039 = vadd.f32 %v1970, %v2038
    %v2040 = vpop.f32.mrb[0].mxu0
    %2041 = vmatprep.mubr.f32.mxu0 0.0
    %2042 = vmatmul.mubr.f32.gmra.mrb[0].mxu0 %v1946
    %v2043 = vpop.f32.mrb[0].mxu0
    %v2044 = vpop.f32.mrb[0].mxu0
    %2045 = vdwg.mxu0
    %v2046 = vadd.f32 %v1833, %v2039
    %s2047 = scalar_lea.vmem %s15, 1
    %v2048 = vld [vmem:[%s2047] sm:$0x1]
    %s2049 = scalar_lea.vmem %s16, 1
    %v2050 = vld [vmem:[%s2049] sm:$0x1]
    %v2051 = vsel %vm83, %v2046, 0.0
    %2052 = vadd.xlane.f32.xlu0 %v2051
    %v2053 = vpop.xlane.xlu0 %2052
    %v2054 = vmul.f32 %v2053, %v870
    %v2055 = vsub.f32 %v2046, %v2054
    %v2056 = vmul.f32 %v2055, %v2055
    %v2057 = vsel %vm83, %v2056, 0.0
    %2058 = vadd.xlane.f32.xlu0 %v2057
    %v2059 = vpop.xlane.xlu0 %2058
    %v2060 = vmul.f32 %v2059, %v870
    %v2061 = vadd.f32 %v2060, 1e-05
    %v2062 = vrsqrt.pop %v2061
    %v2063 = vmul.f32 %v2055, %v2062
    %v2065 = vlaneseq
    %v2066 = vshrl.u32 %v2065, 7
    %v2067 = vsub.s32 0, %v2066
    %v2068 = vrot.slane %v2048, %v2067
    %v2070 = vmul.f32 %v2063, %v2068
    %v2072 = vlaneseq
    %v2073 = vshrl.u32 %v2072, 7
    %v2074 = vsub.s32 0, %v2073
    %v2075 = vrot.slane %v2050, %v2074
    %v2077 = vadd.f32 %v2070, %v2075
    %v2078 = vld [vmem:[%s17] sm:$0x1]
    %v2079 = vld [vmem:[%s18] sm:$0x1]
    %vm2080 = vcmask 254976
    %v2081 = vsel %vm2080, %v2077, 0.0
    %2082 = vadd.xlane.f32.xlu0 %v2081
    %v2083 = vpop.xlane.xlu0 %2082
    %v2084 = vmul.f32 %v2083, %v870
    %v2085 = vsub.f32 %v2077, %v2084
    %v2086 = vmul.f32 %v2085, %v2085
    %v2087 = vsel %vm2080, %v2086, 0.0
    %2088 = vadd.xlane.f32.xlu0 %v2087
    %v2089 = vpop.xlane.xlu0 %2088
    %v2090 = vmul.f32 %v2089, %v870
    %v2091 = vadd.f32 %v2090, 1e-05
    %v2092 = vrsqrt.pop %v2091
    %v2093 = vmul.f32 %v2085, %v2092
    %v2095 = vlaneseq
    %v2096 = vshrl.u32 %v2095, 7
    %v2097 = vsub.s32 0, %v2096
    %v2098 = vrot.slane %v2078, %v2097
    %v2100 = vmul.f32 %v2093, %v2098
    %v2102 = vlaneseq
    %v2103 = vshrl.u32 %v2102, 7
    %v2104 = vsub.s32 0, %v2103
    %v2105 = vrot.slane %v2079, %v2104
    %v2107 = vadd.f32 %v2100, %v2105
    %v2108 = vld [vmem:[%s19] sm:$0xff]
    %v2109 = vld [vmem:[%s19 + $0x8] sm:$0xff]
    %v2110 = vld [vmem:[%s19 + $0x10] sm:$0xff]
    %v2111 = vld [vmem:[%s19 + $0x18] sm:$0xff]
    %v2112 = vld [vmem:[%s20] sm:$0x1]
    %v2114 = vlaneseq
    %v2115 = vshrl.u32 %v2114, 7
    %v2116 = vsub.s32 0, %v2115
    %v2117 = vrot.slane %v2112, %v2116
    %v2120 = vsel %vm83, %v2107, 0
    %2122 = vmatprep.subr.mxu0 0.0
    %2123 = vmatpush1.msra.mxu0 %v2108
    %2124 = vmatprep.subr.mxu0 0.0
    %2125 = vmatpush1.msra.mxu0 %v2109
    %2126 = vmatprep.subr.mxu0 0.0
    %2127 = vmatpush1.msra.mxu0 %v2110
    %2128 = vmatprep.subr.mxu0 0.0
    %2129 = vmatpush1.msra.mxu0 %v2111
    %2130 = vmatprep.subr.mxu0 0.0
    %2131 = vmatpush1.msra.mxu0 0.0
    %2132 = vmatprep.subr.mxu0 0.0
    %2133 = vmatpush1.msra.mxu0 0.0
    %2134 = vmatprep.subr.mxu0 0.0
    %2135 = vmatpush1.msra.mxu0 0.0
    %2136 = vmatprep.subr.mxu0 0.0
    %2137 = vmatpush1.msra.mxu0 0.0
    %2138 = vmatprep.subr.mxu0 0.0
    %2139 = vmatpush1.msra.mxu0 0.0
    %2140 = vmatprep.subr.mxu0 0.0
    %2141 = vmatpush1.msra.mxu0 0.0
    %2142 = vmatprep.subr.mxu0 0.0
    %2143 = vmatpush1.msra.mxu0 0.0
    %2144 = vmatprep.subr.mxu0 0.0
    %2145 = vmatpush1.msra.mxu0 0.0
    %2146 = vmatprep.subr.mxu0 0.0
    %2147 = vmatpush1.msra.mxu0 0.0
    %2148 = vmatprep.subr.mxu0 0.0
    %2149 = vmatpush1.msra.mxu0 0.0
    %2150 = vmatprep.subr.mxu0 0.0
    %2151 = vmatpush1.msra.mxu0 0.0
    %2152 = vmatprep.subr.mxu0 0.0
    %2153 = vmatpush1.msra.mxu0 0.0
    %2154 = vmatprep.subr.mxu0 0.0
    %2155 = vmatpush1.msra.mxu0 0.0
    %2156 = vmatprep.subr.mxu0 0.0
    %2157 = vmatpush1.msra.mxu0 0.0
    %2158 = vmatprep.subr.mxu0 0.0
    %2159 = vmatpush1.msra.mxu0 0.0
    %2160 = vmatprep.subr.mxu0 0.0
    %2161 = vmatpush1.msra.mxu0 0.0
    %2162 = vmatprep.subr.mxu0 0.0
    %2163 = vmatpush1.msra.mxu0 0.0
    %2164 = vmatprep.subr.mxu0 0.0
    %2165 = vmatpush1.msra.mxu0 0.0
    %2166 = vmatprep.subr.mxu0 0.0
    %2167 = vmatpush1.msra.mxu0 0.0
    %2168 = vmatprep.subr.mxu0 0.0
    %2169 = vmatpush1.msra.mxu0 0.0
    %2170 = vmatprep.subr.mxu0 0.0
    %2171 = vmatpush1.msra.mxu0 0.0
    %2172 = vmatprep.subr.mxu0 0.0
    %2173 = vmatpush1.msra.mxu0 0.0
    %2174 = vmatprep.subr.mxu0 0.0
    %2175 = vmatpush1.msra.mxu0 0.0
    %2176 = vmatprep.subr.mxu0 0.0
    %2177 = vmatpush1.msra.mxu0 0.0
    %2178 = vmatprep.subr.mxu0 0.0
    %2179 = vmatpush1.msra.mxu0 0.0
    %2180 = vmatprep.subr.mxu0 0.0
    %2181 = vmatpush1.msra.mxu0 0.0
    %2182 = vmatprep.subr.mxu0 0.0
    %2183 = vmatpush1.msra.mxu0 0.0
    %2184 = vmatprep.subr.mxu0 0.0
    %2185 = vmatpush1.msra.mxu0 0.0
    %2186 = vmatprep.mubr.f32.mxu0 0.0
    %2187 = vmatmul.mubr.f32.gmra.mrb[0].mxu0 %v2120
    %v2188 = vpop.f32.mrb[0].mxu0
    %v2189 = vadd.f32 %v2117, %v2188
    %v2190 = vpop.f32.mrb[0].mxu0
    %2191 = vdwg.mxu0
    %v2192 = vmul.f32 %v2189, 0.5
    %v2193 = vmul.f32 %v2189, 0.044715
    %v2194 = vmul.f32 %v2193, %v2189
    %v2195 = vmul.f32 %v2194, %v2189
    %v2196 = vadd.f32 %v2189, %v2195
    %v2197 = vmul.f32 %v2196, 0.7978846
    %v2198 = vtanh.pop %v2197
    %v2199 = vadd.f32 %v2198, 1.0
    %v2200 = vmul.f32 %v2192, %v2199
    %v2201 = vld [vmem:[%s21] sm:$0xff]
    %v2202 = vld [vmem:[%s21 + $0x8] sm:$0xff]
    %v2203 = vld [vmem:[%s22] sm:$0x1]
    %v2205 = vlaneseq
    %v2206 = vshrl.u32 %v2205, 7
    %v2207 = vsub.s32 0, %v2206
    %v2208 = vrot.slane %v2203, %v2207
    %vm2210 = vcmask 130048
    %v2212 = vsel %vm2210, %v2200, 0
    %2214 = vmatprep.subr.mxu0 0.0
    %2215 = vmatpush1.msra.mxu0 %v2201
    %2216 = vmatprep.subr.mxu0 0.0
    %2217 = vmatpush1.msra.mxu0 %v2202
    %2218 = vmatprep.subr.mxu0 0.0
    %2219 = vmatpush1.msra.mxu0 0.0
    %2220 = vmatprep.subr.mxu0 0.0
    %2221 = vmatpush1.msra.mxu0 0.0
    %2222 = vmatprep.subr.mxu0 0.0
    %2223 = vmatpush1.msra.mxu0 0.0
    %2224 = vmatprep.subr.mxu0 0.0
    %2225 = vmatpush1.msra.mxu0 0.0
    %2226 = vmatprep.subr.mxu0 0.0
    %2227 = vmatpush1.msra.mxu0 0.0
    %2228 = vmatprep.subr.mxu0 0.0
    %2229 = vmatpush1.msra.mxu0 0.0
    %2230 = vmatprep.subr.mxu0 0.0
    %2231 = vmatpush1.msra.mxu0 0.0
    %2232 = vmatprep.subr.mxu0 0.0
    %2233 = vmatpush1.msra.mxu0 0.0
    %2234 = vmatprep.subr.mxu0 0.0
    %2235 = vmatpush1.msra.mxu0 0.0
    %2236 = vmatprep.subr.mxu0 0.0
    %2237 = vmatpush1.msra.mxu0 0.0
    %2238 = vmatprep.subr.mxu0 0.0
    %2239 = vmatpush1.msra.mxu0 0.0
    %2240 = vmatprep.subr.mxu0 0.0
    %2241 = vmatpush1.msra.mxu0 0.0
    %2242 = vmatprep.subr.mxu0 0.0
    %2243 = vmatpush1.msra.mxu0 0.0
    %2244 = vmatprep.subr.mxu0 0.0
    %2245 = vmatpush1.msra.mxu0 0.0
    %2246 = vmatprep.subr.mxu0 0.0
    %2247 = vmatpush1.msra.mxu0 0.0
    %2248 = vmatprep.subr.mxu0 0.0
    %2249 = vmatpush1.msra.mxu0 0.0
    %2250 = vmatprep.subr.mxu0 0.0
    %2251 = vmatpush1.msra.mxu0 0.0
    %2252 = vmatprep.subr.mxu0 0.0
    %2253 = vmatpush1.msra.mxu0 0.0
    %2254 = vmatprep.subr.mxu0 0.0
    %2255 = vmatpush1.msra.mxu0 0.0
    %2256 = vmatprep.subr.mxu0 0.0
    %2257 = vmatpush1.msra.mxu0 0.0
    %2258 = vmatprep.subr.mxu0 0.0
    %2259 = vmatpush1.msra.mxu0 0.0
    %2260 = vmatprep.subr.mxu0 0.0
    %2261 = vmatpush1.msra.mxu0 0.0
    %2262 = vmatprep.subr.mxu0 0.0
    %2263 = vmatpush1.msra.mxu0 0.0
    %2264 = vmatprep.subr.mxu0 0.0
    %2265 = vmatpush1.msra.mxu0 0.0
    %2266 = vmatprep.subr.mxu0 0.0
    %2267 = vmatpush1.msra.mxu0 0.0
    %2268 = vmatprep.subr.mxu0 0.0
    %2269 = vmatpush1.msra.mxu0 0.0
    %2270 = vmatprep.subr.mxu0 0.0
    %2271 = vmatpush1.msra.mxu0 0.0
    %2272 = vmatprep.subr.mxu0 0.0
    %2273 = vmatpush1.msra.mxu0 0.0
    %2274 = vmatprep.subr.mxu0 0.0
    %2275 = vmatpush1.msra.mxu0 0.0
    %2276 = vmatprep.subr.mxu0 0.0
    %2277 = vmatpush1.msra.mxu0 0.0
    %2278 = vmatprep.mubr.f32.mxu0 0.0
    %2279 = vmatmul.mubr.f32.gmra.mrb[0].mxu0 %v2212
    %v2280 = vpop.f32.mrb[0].mxu0
    %v2281 = vadd.f32 %v2208, %v2280
    %v2282 = vpop.f32.mrb[0].mxu0
    %2283 = vdwg.mxu0
    %2284 = vst [vmem:[#allocation2] sm:$0x3] %v2281
    // Predicated region
    $region94: #{tpu_custom_call.1} parent=1 // pred_check
      _
    $region95: #{tpu_custom_call.1} parent=1 // pred_check_branch
      %2286 = sbr.rel (0) target = $region97
    $region96: #{tpu_custom_call.1} parent=1 // pred_region
      %s2288 = ssub.s32 32, 32
      %2289 = vsyncadd [#allocation3], %s2288
      %s2291 = sshll.u32 [#allocation2], 4
      %s2292 = int_to_ptr.vmem [resolvable:$true] %s2291
      %2294 = dma.vmem_to_hbm [thread:$0]  %s2292, 32, %s23, [#allocation3]
    $region97: #{tpu_custom_call.1} parent=1 // pred_fallthru
      _
    // Predicated region
    $region98: #{tpu_custom_call.1} parent=1 // pred_check
      _
    $region99: #{tpu_custom_call.1} parent=1 // pred_check_branch
      %2296 = sbr.rel (0) target = $region101
    $region100: #{tpu_custom_call.1} parent=1 // pred_region
      %2297 = dma.done [#allocation3], 32
    $region101: #{tpu_custom_call.1} parent=1 // pred_fallthru
      _
    %2298 = vsyncpa [#allocation3], 1

</llo_original>
